<compile_context>
chip_gen: v6e
topology: v6e:2x2x1
jax: 0.10.0
libtpu: 0.0.40
codegen_flags: <defaults>
</compile_context>

<pallas_src>
import math

import jax
import jax.numpy as jnp
from jax import lax
from jax.experimental import pallas as pl
from jax.experimental.pallas import tpu as pltpu


def _round_up(x: int, m: int) -> int:
    return ((x + m - 1) // m) * m


def _make_adnce_kernel(n_valid, tm, temperature, mu, sigma):
    inv_temp = 1.0 / temperature
    inv_sigma = 1.0 / sigma
    # Gaussian weight at a zeroed logit (the fill_diagonal_(0) entry).  The
    # 1/(sigma*sqrt(2*pi)) coefficient is dropped: it cancels in w / mean(w).
    w_at_zero = math.exp(-0.5 * (mu * inv_sigma) ** 2)
    neg_big = -1e30

    def kernel(q_ref, p_ref, out_ref):
        tile = pl.program_id(0)
        row_start = pl.multiple_of(tile * tm, tm)

        q = q_ref[...].astype(jnp.float32)          # (tm, Dp)
        p = p_ref[...].astype(jnp.float32)          # (Np, Dp)
        n_pad = p.shape[0]
        pad_cols = n_pad - n_valid                  # static Python int

        # F.normalize(x, dim=-1): x / max(||x||, 1e-12) == x * rsqrt(max(||x||^2, 1e-24))
        qn = q * lax.rsqrt(jnp.maximum(jnp.sum(q * q, axis=-1, keepdims=True), 1e-24))
        pn = p * lax.rsqrt(jnp.maximum(jnp.sum(p * p, axis=-1, keepdims=True), 1e-24))

        # (tm, Np) similarity tile on the MXU; contract over D of both operands
        # (rhs consumed in its native "transposed" form -> no relayout of pn).
        # NOTE: kept in f32; cast qn/pn to bf16 here for more MXU throughput if
        # reduced precision is acceptable.
        logits = lax.dot_general(
            qn, pn,
            dimension_numbers=(((1,), (1,)), ((), ())),
            preferred_element_type=jnp.float32,
        )

        # Diagonal entries of this row block, computed directly as row-wise dots
        # with the matching positive rows (cheaper than a masked (tm,Np) extract).
        p_diag = p_ref[pl.ds(row_start, tm), :].astype(jnp.float32)
        pn_diag = p_diag * lax.rsqrt(
            jnp.maximum(jnp.sum(p_diag * p_diag, axis=-1, keepdims=True), 1e-24))
        diag_val = jnp.sum(qn * pn_diag, axis=-1, keepdims=True)       # (tm, 1)

        # Gaussian re-weighting.
        w = jnp.exp(-0.5 * ((logits - mu) * inv_sigma) ** 2)           # (tm, Np)
        w_diag = jnp.exp(-0.5 * ((diag_val - mu) * inv_sigma) ** 2)    # (tm, 1)

        # torch's weight.mean over the N real columns of the diag-zeroed logits:
        #   sum_{j!=i} w(logit_ij) + w(0)
        # Replace the diagonal term and drop the padded key columns (whose logits
        # are an exact 0, hence contribute exactly w(0) each) via scalar fixes.
        w_sum = jnp.sum(w, axis=-1, keepdims=True) - w_diag + w_at_zero
        if pad_cols:
            w_sum = w_sum - pad_cols * w_at_zero
        # weight / mean(weight) == weight * (N / sum).  The reciprocal is only a
        # (tm,1) vector (kept exact); the per-element cost is the broadcast mul.
        inv_mean = n_valid * pl.reciprocal(w_sum, approx=False)        # (tm, 1)

        # Off-diagonal: logits * normalised weight; diagonal: original logit.
        row_ids = row_start + lax.broadcasted_iota(jnp.int32, (tm, 1), 0)
        col_ids = lax.broadcasted_iota(jnp.int32, (tm, n_pad), 1)
        diag = col_ids == row_ids
        z = jnp.where(diag, logits, logits * (w * inv_mean)) * inv_temp
        if pad_cols:
            # Padded key columns must vanish from the softmax.
            z = jnp.where(col_ids < n_valid, z, neg_big)

        # Row-wise cross entropy with label == row index: lse(z) - z[diag].
        m = jnp.max(z, axis=-1, keepdims=True)
        lse = m + jnp.log(jnp.sum(jnp.exp(z - m), axis=-1, keepdims=True))
        out_ref[...] = lse - diag_val * inv_temp                       # (tm, 1)

    return kernel


def adnce_pallas(query, positive_key, *, temperature=0.1, mu=0.2, sigma=1.0,
                 block_rows=128):
    """ADNCE loss (negative_keys=None path, reduction='mean').  Inputs: (N, D)."""
    if query.ndim != 2 or positive_key.ndim != 2:
        raise ValueError("query / positive_key must be 2-D")
    if query.shape != positive_key.shape:
        raise ValueError("query and positive_key must have the same shape")
    n, d = query.shape

    q = query.astype(jnp.float32)
    p = positive_key.astype(jnp.float32)

    # Lane-dense feature dim (zero padding changes neither norms nor dot products).
    d_pad = _round_up(max(d, 128), 128)
    # Row tile: multiple of 8 sublanes.  128 fully feeds the v5e MXU; pass
    # block_rows=256 on v6e/v7x when the similarity matmul dominates.
    tm = min(_round_up(block_rows, 8), _round_up(n, 8))
    n_pad = _round_up(n, tm)

    if d_pad != d or n_pad != n:
        q = jnp.pad(q, ((0, n_pad - n), (0, d_pad - d)))
        p = jnp.pad(p, ((0, n_pad - n), (0, d_pad - d)))

    num_tiles = n_pad // tm
    kernel = _make_adnce_kernel(n, tm, temperature, mu, sigma)

    per_row = pl.pallas_call(
        kernel,
        out_shape=jax.ShapeDtypeStruct((n_pad, 1), jnp.float32),
        grid_spec=pltpu.PrefetchScalarGridSpec(
            num_scalar_prefetch=0,
            grid=(num_tiles,),
            in_specs=[
                # q: one (tm, d_pad) row block per grid step (pipelined DMA).
                pl.BlockSpec((tm, d_pad), lambda i: (i, 0)),
                # p: full matrix, constant block index -> fetched once, resident.
                pl.BlockSpec((n_pad, d_pad), lambda i: (0, 0)),
            ],
            out_specs=pl.BlockSpec((tm, 1), lambda i: (i, 0)),
        ),
        compiler_params=pltpu.CompilerParams(
            # Row blocks are independent -> shard across v7x's 2 TensorCores.
            dimension_semantics=("parallel",),
            # Explicit budget with headroom below v7x's 64 MiB physical VMEM.
            vmem_limit_bytes=48 * 1024 * 1024,
        ),
    )(q, p)

    # reduction='mean' over the real rows (padded rows are simply not read).
    return jnp.sum(per_row[:n, 0]) / n

    # TODO(synk): negative_keys='unpaired'/'paired' branches of the PyTorch module
    # are not exercised by forward(query, positive_key) and are not implemented.


def adnce_reference(query, positive_key, *, temperature=0.1, mu=0.2, sigma=1.0):
    """Pure-JAX reference mirroring the PyTorch code (negative_keys=None path)."""
    q = query / jnp.maximum(jnp.linalg.norm(query, axis=-1, keepdims=True), 1e-12)
    p = positive_key / jnp.maximum(
        jnp.linalg.norm(positive_key, axis=-1, keepdims=True), 1e-12)
    logits = jnp.dot(q, p.T, precision=jax.lax.Precision.HIGHEST)
    n = logits.shape[0]
    eye = jnp.eye(n, dtype=bool)
    neg_logits = jnp.where(eye, 0.0, logits)
    w = (1.0 / (sigma * math.sqrt(2.0 * math.pi))) * jnp.exp(
        -0.5 * ((neg_logits - mu) / sigma) ** 2)
    w = w / jnp.mean(w, axis=-1, keepdims=True)
    adjusted = jnp.where(eye, logits, logits * w)
    z = adjusted / temperature
    lse = jax.scipy.special.logsumexp(z, axis=-1)
    return jnp.mean(lse - jnp.diag(z))


if __name__ == "__main__":
    key = jax.random.PRNGKey(0)
    k1, k2, k3, k4 = jax.random.split(key, 4)

    # Tolerance leaves room for MXU f32 multi-pass vs. XLA matmul rounding
    # differences; structural bugs produce errors orders of magnitude larger.
    RTOL = ATOL = 5e-3

    # Case 1: both dims need padding (N=200 -> 256 rows / 2 row tiles, D=48 -> 128).
    q1 = jax.random.normal(k1, (200, 48), dtype=jnp.float32)
    p1 = jax.random.normal(k2, (200, 48), dtype=jnp.float32)
    out1 = jax.block_until_ready(adnce_pallas(q1, p1))
    ref1 = adnce_reference(q1, p1)
    assert jnp.allclose(out1, ref1, rtol=RTOL, atol=ATOL), (out1, ref1)

    # Case 2: already aligned (N=256 = 2 tiles of 128, D=128), non-default mu/sigma.
    q2 = jax.random.normal(k3, (256, 128), dtype=jnp.float32)
    p2 = jax.random.normal(k4, (256, 128), dtype=jnp.float32)
    out2 = jax.block_until_ready(
        adnce_pallas(q2, p2, temperature=0.1, mu=0.1, sigma=0.8))
    ref2 = adnce_reference(q2, p2, temperature=0.1, mu=0.1, sigma=0.8)
    assert jnp.allclose(out2, ref2, rtol=RTOL, atol=ATOL), (out2, ref2)

    print("KERNEL_OK")
</pallas_src>

<mosaic_0001>
module attributes {stable_mosaic.version = 11 : i64} {
  func.func @kernel(%arg0: i32, %arg1: memref<128x128xf32, #tpu.memory_space<vmem>>, %arg2: memref<256x128xf32, #tpu.memory_space<vmem>>, %arg3: memref<128x1xf32, #tpu.memory_space<vmem>>) attributes {dimension_semantics = [#tpu.dimension_semantics<parallel>], iteration_bounds = array<i64: 2>, scalar_prefetch = 0 : i64, scratch_operands = 0 : i64, tpu.core_type = #tpu.core_type<tc>, window_params = [{transform_indices = @transform_0, window_bounds = array<i64: 128, 128>}, {pipeline_mode = #tpu.pipeline_mode<synchronous>, transform_indices = @transform_1, window_bounds = array<i64: 256, 128>}, {transform_indices = @transform_2, window_bounds = array<i64: 128, 1>}]} {
    %c128_i32 = arith.constant 128 : i32
    %0 = arith.muli %arg0, %c128_i32 : i32
    %1 = tpu.assume_multiple %0, 128 : i32
    %c0 = arith.constant 0 : index
    %c0_0 = arith.constant 0 : index
    %2 = vector.load %arg1[%c0, %c0_0] : memref<128x128xf32, #tpu.memory_space<vmem>>, vector<128x128xf32>
    %c0_1 = arith.constant 0 : index
    %c0_2 = arith.constant 0 : index
    %3 = vector.load %arg2[%c0_1, %c0_2] : memref<256x128xf32, #tpu.memory_space<vmem>>, vector<256x128xf32>
    %4 = arith.mulf %2, %2 : vector<128x128xf32>
    %cst = arith.constant dense<0.000000e+00> : vector<128xf32>
    %5 = vector.multi_reduction <add>, %4, %cst [1] : vector<128x128xf32> to vector<128xf32>
    %6 = vector.shape_cast %5 : vector<128xf32> to vector<128x1xf32>
    %cst_3 = arith.constant 1.000000e-24 : f32
    %7 = vector.broadcast %cst_3 : f32 to vector<128x1xf32>
    %8 = arith.maximumf %6, %7 : vector<128x1xf32>
    %9 = math.rsqrt %8 : vector<128x1xf32>
    %10 = vector.broadcast %9 : vector<128x1xf32> to vector<128x128xf32>
    %11 = arith.mulf %2, %10 : vector<128x128xf32>
    %12 = arith.mulf %3, %3 : vector<256x128xf32>
    %cst_4 = arith.constant dense<0.000000e+00> : vector<256xf32>
    %13 = vector.multi_reduction <add>, %12, %cst_4 [1] : vector<256x128xf32> to vector<256xf32>
    %14 = vector.shape_cast %13 : vector<256xf32> to vector<256x1xf32>
    %cst_5 = arith.constant 1.000000e-24 : f32
    %15 = vector.broadcast %cst_5 : f32 to vector<256x1xf32>
    %16 = arith.maximumf %14, %15 : vector<256x1xf32>
    %17 = math.rsqrt %16 : vector<256x1xf32>
    %18 = vector.broadcast %17 : vector<256x1xf32> to vector<256x128xf32>
    %19 = arith.mulf %3, %18 : vector<256x128xf32>
    %cst_6 = arith.constant dense<0.000000e+00> : vector<128x256xf32>
    %20 = tpu.matmul %11, %19, %cst_6 {dimension_numbers = #tpu.dot_dimension_numbers<[1], [1], [0], [0], [0, 0, 1, 0], [], []>} : vector<128x128xf32>, vector<256x128xf32>, vector<128x256xf32> -> vector<128x256xf32>
    %21 = arith.index_cast %1 : i32 to index
    %c0_7 = arith.constant 0 : index
    %22 = vector.load %arg2[%21, %c0_7] : memref<256x128xf32, #tpu.memory_space<vmem>>, vector<128x128xf32>
    %23 = arith.mulf %22, %22 : vector<128x128xf32>
    %cst_8 = arith.constant dense<0.000000e+00> : vector<128xf32>
    %24 = vector.multi_reduction <add>, %23, %cst_8 [1] : vector<128x128xf32> to vector<128xf32>
    %25 = vector.shape_cast %24 : vector<128xf32> to vector<128x1xf32>
    %cst_9 = arith.constant 1.000000e-24 : f32
    %26 = vector.broadcast %cst_9 : f32 to vector<128x1xf32>
    %27 = arith.maximumf %25, %26 : vector<128x1xf32>
    %28 = math.rsqrt %27 : vector<128x1xf32>
    %29 = vector.broadcast %28 : vector<128x1xf32> to vector<128x128xf32>
    %30 = arith.mulf %22, %29 : vector<128x128xf32>
    %31 = arith.mulf %11, %30 : vector<128x128xf32>
    %cst_10 = arith.constant dense<0.000000e+00> : vector<128xf32>
    %32 = vector.multi_reduction <add>, %31, %cst_10 [1] : vector<128x128xf32> to vector<128xf32>
    %33 = vector.shape_cast %32 : vector<128xf32> to vector<128x1xf32>
    %cst_11 = arith.constant 2.000000e-01 : f32
    %34 = vector.broadcast %cst_11 : f32 to vector<128x256xf32>
    %35 = arith.subf %20, %34 : vector<128x256xf32>
    %cst_12 = arith.constant 1.000000e+00 : f32
    %36 = vector.broadcast %cst_12 : f32 to vector<128x256xf32>
    %37 = arith.mulf %35, %36 : vector<128x256xf32>
    %38 = arith.mulf %37, %37 : vector<128x256xf32>
    %cst_13 = arith.constant -5.000000e-01 : f32
    %39 = vector.broadcast %cst_13 : f32 to vector<128x256xf32>
    %40 = arith.mulf %39, %38 : vector<128x256xf32>
    %41 = math.exp %40 : vector<128x256xf32>
    %cst_14 = arith.constant 2.000000e-01 : f32
    %42 = vector.broadcast %cst_14 : f32 to vector<128x1xf32>
    %43 = arith.subf %33, %42 : vector<128x1xf32>
    %cst_15 = arith.constant 1.000000e+00 : f32
    %44 = vector.broadcast %cst_15 : f32 to vector<128x1xf32>
    %45 = arith.mulf %43, %44 : vector<128x1xf32>
    %46 = arith.mulf %45, %45 : vector<128x1xf32>
    %cst_16 = arith.constant -5.000000e-01 : f32
    %47 = vector.broadcast %cst_16 : f32 to vector<128x1xf32>
    %48 = arith.mulf %47, %46 : vector<128x1xf32>
    %49 = math.exp %48 : vector<128x1xf32>
    %cst_17 = arith.constant dense<0.000000e+00> : vector<128xf32>
    %50 = vector.multi_reduction <add>, %41, %cst_17 [1] : vector<128x256xf32> to vector<128xf32>
    %51 = vector.shape_cast %50 : vector<128xf32> to vector<128x1xf32>
    %52 = arith.subf %51, %49 : vector<128x1xf32>
    %cst_18 = arith.constant 0.980198681 : f32
    %53 = vector.broadcast %cst_18 : f32 to vector<128x1xf32>
    %54 = arith.addf %52, %53 : vector<128x1xf32>
    %cst_19 = arith.constant 54.8911247 : f32
    %55 = vector.broadcast %cst_19 : f32 to vector<128x1xf32>
    %56 = arith.subf %54, %55 : vector<128x1xf32>
    %57 = tpu.reciprocal %56 : vector<128x1xf32> -> vector<128x1xf32>
    %cst_20 = arith.constant 2.000000e+02 : f32
    %58 = vector.broadcast %cst_20 : f32 to vector<128x1xf32>
    %59 = arith.mulf %58, %57 : vector<128x1xf32>
    %60 = tpu.iota {dimensions = array<i32: 0>} : vector<128x1xi32>
    %61 = vector.broadcast %1 : i32 to vector<128x1xi32>
    %62 = arith.addi %61, %60 : vector<128x1xi32>
    %63 = tpu.iota {dimensions = array<i32: 1>} : vector<128x256xi32>
    %64 = vector.broadcast %62 : vector<128x1xi32> to vector<128x256xi32>
    %65 = arith.cmpi eq, %63, %64 : vector<128x256xi32>
    %66 = vector.broadcast %59 : vector<128x1xf32> to vector<128x256xf32>
    %67 = arith.mulf %41, %66 : vector<128x256xf32>
    %68 = arith.mulf %20, %67 : vector<128x256xf32>
    %69 = arith.select %65, %20, %68 : vector<128x256xi1>, vector<128x256xf32>
    %cst_21 = arith.constant 1.000000e+01 : f32
    %70 = vector.broadcast %cst_21 : f32 to vector<128x256xf32>
    %71 = arith.mulf %69, %70 : vector<128x256xf32>
    %c200_i32 = arith.constant 200 : i32
    %72 = vector.broadcast %c200_i32 : i32 to vector<128x256xi32>
    %73 = arith.cmpi slt, %63, %72 : vector<128x256xi32>
    %cst_22 = arith.constant -1.000000e+30 : f32
    %74 = vector.broadcast %cst_22 : f32 to vector<128x256xf32>
    %75 = arith.select %73, %71, %74 : vector<128x256xi1>, vector<128x256xf32>
    %cst_23 = arith.constant dense<0xFF800000> : vector<128xf32>
    %76 = vector.multi_reduction <maximumf>, %75, %cst_23 [1] : vector<128x256xf32> to vector<128xf32>
    %77 = vector.shape_cast %76 : vector<128xf32> to vector<128x1xf32>
    %78 = vector.broadcast %77 : vector<128x1xf32> to vector<128x256xf32>
    %79 = arith.subf %75, %78 : vector<128x256xf32>
    %80 = math.exp %79 : vector<128x256xf32>
    %cst_24 = arith.constant dense<0.000000e+00> : vector<128xf32>
    %81 = vector.multi_reduction <add>, %80, %cst_24 [1] : vector<128x256xf32> to vector<128xf32>
    %82 = vector.shape_cast %81 : vector<128xf32> to vector<128x1xf32>
    %83 = math.log %82 : vector<128x1xf32>
    %84 = arith.addf %77, %83 : vector<128x1xf32>
    %cst_25 = arith.constant 1.000000e+01 : f32
    %85 = vector.broadcast %cst_25 : f32 to vector<128x1xf32>
    %86 = arith.mulf %33, %85 : vector<128x1xf32>
    %87 = arith.subf %84, %86 : vector<128x1xf32>
    %c0_26 = arith.constant 0 : index
    %c0_27 = arith.constant 0 : index
    %88 = vector.load %arg3[%c0_26, %c0_27] : memref<128x1xf32, #tpu.memory_space<vmem>>, vector<128x1xf32>
    tpu.vector_store %arg3[%c0_26, %c0_27], %87 {strides = array<i32>} : memref<128x1xf32, #tpu.memory_space<vmem>>, vector<128x1xf32>,
    return
  }
  func.func @transform_0(%arg0: i32) -> (i32, i32) {
    %c0_i32 = arith.constant 0 : i32
    %c0_i32_0 = arith.constant 0 : i32
    return %arg0, %c0_i32 : i32, i32
  }
  func.func @transform_1(%arg0: i32) -> (i32, i32) {
    %c0_i32 = arith.constant 0 : i32
    %c0_i32_0 = arith.constant 0 : i32
    %c0_i32_1 = arith.constant 0 : i32
    return %c0_i32, %c0_i32_0 : i32, i32
  }
  func.func @transform_2(%arg0: i32) -> (i32, i32) {
    %c0_i32 = arith.constant 0 : i32
    %c0_i32_0 = arith.constant 0 : i32
    return %arg0, %c0_i32 : i32, i32
  }
}

</mosaic_0001>

<llo_original>
// kernel: tpu_custom_call.1
$region0: #{tpu_custom_call.1}
  #allocation0 [shape = 'u32[]', space=smem, size = 0x4, offset = 0x4, fixed_abs, tag = 'smem constant byte address 0x4 - core index']
  #allocation1 [shape = 'u32[144,128]{1,0:T(1,128)}', space=vmem, size = 0x12000, scoped, tag = 'internal scratch']
  %s0 = inlined_call_operand.hbm [shape: f32[256,128], index: 0, kind: input, shape index: {}]
  %s1 = inlined_call_operand.hbm [shape: f32[256,128], index: 1, kind: input, shape index: {}]
  %s2 = inlined_call_operand.vmem [shape: f32[256,1], index: 2, kind: output, shape index: {}]
  %s3 = sld [smem:[#allocation0]]
  $region49: #{tpu_custom_call.1} parent=0
    _
  %s5 = ssub.s32 1, %s3
  %s6 = scalar_select 0, %s5, %s3
  $region1: #{tpu_custom_call.1} parent=0
    #allocation2 [shape = 'u8[131072]{0}', space=vmem, size = 0x20000, scoped, tag = 'input window, operand 0']
    #allocation3 [shape = 's32[2]{0}', space=sflag, size = 0x8, scoped, tag = 'scoped memory for tpu_custom_call.1']
    #allocation4 [shape = 'u8[131072]{0}', space=vmem, size = 0x20000, scoped, tag = 'input window, operand 1, single buffered']
    #allocation5 [shape = 's32[1]{0}', space=sflag, size = 0x4, scoped, tag = 'scoped memory for tpu_custom_call.1']
    %7 = vsyncpa [#allocation3], 0
    %s8 = scalar_lea.sflag [#allocation3], 1
    %9 = vsyncpa %s8, 0
    %10 = vsyncpa [#allocation5], 0
    loop: start=0, step=1, limit=4
    $region2: #{tpu_custom_call.1} parent=1 // loop_pre_header
      _
    $region3: #{tpu_custom_call.1} parent=1 // loop_header
      %s12 = sphi 0, %s16
      %p13 = scmp.ge.s32.totalorder %s12, 4
      %s22 = sphi 0, %s24
      %s25 = sphi 0, %s22
      %s26 = sphi 0, %s25
      %s42 = sphi 0, %s26
      %s46 = sphi 0, %s46
      %s48 = sphi 0, %s46
      %s49 = sphi 0, %s48
      %s63 = sphi 0, %s49
      %s69 = sphi 0, %s71
      %s72 = sphi 0, %s69
      %s73 = sphi 0, %s72
      %s89 = sphi 0, %s73
    $region4: #{tpu_custom_call.1} parent=1 // loop_header_branch
      %15 = sbr.rel (%p13) target = $region8
    $region5: #{tpu_custom_call.1} parent=1 // loop_body
      %s17 = ssub.s32 %s12, 1
      %s18 = ssub.s32 %s12, 2
      %s19 = sadd.s32 %s12, 1
      %s20 = ssub.s32 %s12, %s19
      %p21 = scmp.eq.s32.totalorder %s20, 0
      %s23 = sadd.s32 %s22, 1
      %s24 = scalar_select %p21, %s22, %s23
      %p27 = pneg %p21
      %p28 = scmp.eq.s32.totalorder %s12, 1
      %p29 = por %p27, %p28
      %p30 = scmp.ne.s32.totalorder %s22, %s25
      %p31 = scmp.eq.s32.totalorder %s12, 0
      %p32 = por %p30, %p31
      %p33 = scmp.ne.s32.totalorder %s22, %s25
      %p34 = scmp.eq.s32.totalorder %s17, 1
      %p35 = por %p33, %p34
      %p36 = scmp.ne.s32.totalorder %s25, %s26
      %p37 = scmp.eq.s32.totalorder %s17, 0
      %p38 = por %p36, %p37
      %p39 = scmp.ne.s32.totalorder %s25, %s26
      %p40 = scmp.eq.s32.totalorder %s18, 1
      %p41 = por %p39, %p40
      %p43 = scmp.ne.s32.totalorder %s26, %s42
      %p44 = scmp.eq.s32.totalorder %s18, 0
      %p45 = por %p43, %p44
      %s47 = sadd.s32 %s46, 1
      %p50 = scmp.eq.s32.totalorder %s12, 1
      %p51 = scmp.ne.s32.totalorder %s46, %s48
      %p52 = scmp.eq.s32.totalorder %s12, 0
      %p53 = por %p51, %p52
      %p54 = scmp.ne.s32.totalorder %s46, %s48
      %p55 = scmp.eq.s32.totalorder %s17, 1
      %p56 = por %p54, %p55
      %p57 = scmp.ne.s32.totalorder %s48, %s49
      %p58 = scmp.eq.s32.totalorder %s17, 0
      %p59 = por %p57, %p58
      %p60 = scmp.ne.s32.totalorder %s48, %s49
      %p61 = scmp.eq.s32.totalorder %s18, 1
      %p62 = por %p60, %p61
      %p64 = scmp.ne.s32.totalorder %s49, %s63
      %p65 = scmp.eq.s32.totalorder %s18, 0
      %p66 = por %p64, %p65
      %s67 = ssub.s32 %s12, %s19
      %p68 = scmp.eq.s32.totalorder %s67, 0
      %s70 = sadd.s32 %s69, 1
      %s71 = scalar_select %p68, %s69, %s70
      %p74 = pneg %p68
      %p75 = scmp.eq.s32.totalorder %s12, 1
      %p76 = por %p74, %p75
      %p77 = scmp.ne.s32.totalorder %s69, %s72
      %p78 = scmp.eq.s32.totalorder %s12, 0
      %p79 = por %p77, %p78
      %p80 = scmp.ne.s32.totalorder %s69, %s72
      %p81 = scmp.eq.s32.totalorder %s17, 1
      %p82 = por %p80, %p81
      %p83 = scmp.ne.s32.totalorder %s72, %s73
      %p84 = scmp.eq.s32.totalorder %s17, 0
      %p85 = por %p83, %p84
      %p86 = scmp.ne.s32.totalorder %s72, %s73
      %p87 = scmp.eq.s32.totalorder %s18, 1
      %p88 = por %p86, %p87
      %p90 = scmp.ne.s32.totalorder %s73, %s89
      %p91 = scmp.eq.s32.totalorder %s18, 0
      %p92 = por %p90, %p91
      %p93 = scmp.le.s32.totalorder 1, %s12
      %p94 = scmp.lt.s32.totalorder %s12, 3
      %p95 = pnand %p93, %p94
      %p96 = pneg %p95
      // Predicated region
      $region9: #{tpu_custom_call.1} parent=5 // pred_check
        _
      $region10: #{tpu_custom_call.1} parent=5 // pred_check_branch
        %98 = sbr.rel (%p95) target = $region12
      $region11: #{tpu_custom_call.1} parent=5 // pred_region
        %s99 = ssub.s32 %s12, 1
        // Predicated region
        $region13: #{tpu_custom_call.1} parent=11 // pred_check
          %p100 = pneg %p59
        $region14: #{tpu_custom_call.1} parent=11 // pred_check_branch
          %102 = sbr.rel (%p100) target = $region16
        $region15: #{tpu_custom_call.1} parent=11 // pred_region
          %s104 = ssub.s32 4096, 4096
          %105 = vsyncadd [#allocation5], %s104
          %s106 = sshll.u32 [#allocation4], 4
          %s107 = int_to_ptr.vmem [resolvable:$true] %s106
          %112 = dma.hbm_to_vmem [thread:$0]  %s1, 4096, %s107, [#allocation5], 128, 128, 8
        $region16: #{tpu_custom_call.1} parent=11 // pred_fallthru
          _
      $region12: #{tpu_custom_call.1} parent=5 // pred_fallthru
        _
      %p113 = scmp.lt.s32.totalorder %s12, 2
      // Predicated region
      $region17: #{tpu_custom_call.1} parent=5 // pred_check
        %p114 = pneg %p113
      $region18: #{tpu_custom_call.1} parent=5 // pred_check_branch
        %116 = sbr.rel (%p114) target = $region20
      $region19: #{tpu_custom_call.1} parent=5 // pred_region
        // Predicated region
        $region21: #{tpu_custom_call.1} parent=19 // pred_check
          %p117 = pneg %p32
        $region22: #{tpu_custom_call.1} parent=19 // pred_check_branch
          %119 = sbr.rel (%p117) target = $region24
        $region23: #{tpu_custom_call.1} parent=19 // pred_region
          %s120 = sand.u32 %s22, 1
          %s121 = scalar_lea.sflag [#allocation3], %s120
          %s122 = sand.u32 %s22, 1
          %s123 = smul.addr %s122, 128
          %s124 = scalar_lea.vmem [#allocation2], %s123
          %s125 = smul.u32 16, %s12
          %s127 = ssub.s32 2048, 2048
          %128 = vsyncadd %s121, %s127
          %s129 = smul.addr %s125, 128
          %s130 = scalar_lea.hbm %s0, %s129
          %s131 = sshll.u32 %s124, 4
          %s132 = int_to_ptr.vmem [resolvable:$true] %s131
          %137 = dma.hbm_to_vmem [thread:$0]  %s130, 2048, %s132, %s121, 128, 128, 8
        $region24: #{tpu_custom_call.1} parent=19 // pred_fallthru
          _
      $region20: #{tpu_custom_call.1} parent=5 // pred_fallthru
        _
      %p138 = scmp.le.s32.totalorder 1, %s12
      %p139 = scmp.lt.s32.totalorder %s12, 3
      %p140 = pnand %p138, %p139
      %p141 = pneg %p140
      // Predicated region
      $region25: #{tpu_custom_call.1} parent=5 // pred_check
        _
      $region26: #{tpu_custom_call.1} parent=5 // pred_check_branch
        %143 = sbr.rel (%p140) target = $region28
      $region27: #{tpu_custom_call.1} parent=5 // pred_region
        %s144 = ssub.s32 %s12, 1
        %s145 = sand.u32 %s25, 1
        %s146 = scalar_lea.sflag [#allocation3], %s145
        %s147 = sand.u32 %s25, 1
        %s148 = smul.addr %s147, 128
        %s149 = scalar_lea.vmem [#allocation2], %s148
        // Predicated region
        $region29: #{tpu_custom_call.1} parent=27 // pred_check
          %p150 = pneg %p38
        $region30: #{tpu_custom_call.1} parent=27 // pred_check_branch
          %152 = sbr.rel (%p150) target = $region32
        $region31: #{tpu_custom_call.1} parent=27 // pred_region
          %153 = dma.done %s146, 2048
        $region32: #{tpu_custom_call.1} parent=27 // pred_fallthru
          _
        // Predicated region
        $region33: #{tpu_custom_call.1} parent=27 // pred_check
          %p154 = pneg %p59
        $region34: #{tpu_custom_call.1} parent=27 // pred_check_branch
          %156 = sbr.rel (%p154) target = $region36
        $region35: #{tpu_custom_call.1} parent=27 // pred_region
          %157 = dma.done [#allocation5], 4096
        $region36: #{tpu_custom_call.1} parent=27 // pred_fallthru
          _
        %s158 = sand.u32 %s25, 1
        %s159 = scalar_lea.sflag [#allocation3], %s158
        %s160 = sand.u32 %s25, 1
        %s161 = smul.addr %s160, 128
        %s162 = scalar_lea.vmem [#allocation2], %s161
        %p163 = pneg %p38
        %p164 = pneg %p35
        %p165 = pneg %p59
        %p166 = pneg %p56
        %p167 = pneg %p85
        %p168 = pneg %p82
        %s169 = smul.u32 16, %s17
        %p170 = scmp.lt.s32.totalorder %s169, 31
        %s171 = scalar_select %p170, %s169, 31
        %s172 = smul.addr %s171, 8
        %s173 = scalar_lea.vmem %s2, %s172
        %s174 = smul.u32 16, %s17
        %s175 = smul.u32 16, %s17
        %p176 = scmp.lt.s32.totalorder %s175, 31
        %s177 = scalar_select %p176, %s175, 31
        %s178 = smul.addr %s177, 8
        %s179 = scalar_lea.vmem %s2, %s178
        %s180 = smul.u32 16, %s17
        %s181 = smul.u32 %s17, 128
        %v182 = vld [vmem:[%s149] sm:$0xff]
        %v183 = vld [vmem:[%s149 + $0x8] sm:$0xff]
        %v184 = vld [vmem:[%s149 + $0x10] sm:$0xff]
        %v185 = vld [vmem:[%s149 + $0x18] sm:$0xff]
        %v186 = vld [vmem:[%s149 + $0x20] sm:$0xff]
        %v187 = vld [vmem:[%s149 + $0x28] sm:$0xff]
        %v188 = vld [vmem:[%s149 + $0x30] sm:$0xff]
        %v189 = vld [vmem:[%s149 + $0x38] sm:$0xff]
        %v190 = vld [vmem:[%s149 + $0x40] sm:$0xff]
        %v191 = vld [vmem:[%s149 + $0x48] sm:$0xff]
        %v192 = vld [vmem:[%s149 + $0x50] sm:$0xff]
        %v193 = vld [vmem:[%s149 + $0x58] sm:$0xff]
        %v194 = vld [vmem:[%s149 + $0x60] sm:$0xff]
        %v195 = vld [vmem:[%s149 + $0x68] sm:$0xff]
        %v196 = vld [vmem:[%s149 + $0x70] sm:$0xff]
        %v197 = vld [vmem:[%s149 + $0x78] sm:$0xff]
        %v198 = vld [vmem:[#allocation4] sm:$0xff]
        %v199 = vld [vmem:[#allocation4 + $0x8] sm:$0xff]
        %v200 = vld [vmem:[#allocation4 + $0x10] sm:$0xff]
        %v201 = vld [vmem:[#allocation4 + $0x18] sm:$0xff]
        %v202 = vld [vmem:[#allocation4 + $0x20] sm:$0xff]
        %v203 = vld [vmem:[#allocation4 + $0x28] sm:$0xff]
        %v204 = vld [vmem:[#allocation4 + $0x30] sm:$0xff]
        %v205 = vld [vmem:[#allocation4 + $0x38] sm:$0xff]
        %v206 = vld [vmem:[#allocation4 + $0x40] sm:$0xff]
        %v207 = vld [vmem:[#allocation4 + $0x48] sm:$0xff]
        %v208 = vld [vmem:[#allocation4 + $0x50] sm:$0xff]
        %v209 = vld [vmem:[#allocation4 + $0x58] sm:$0xff]
        %v210 = vld [vmem:[#allocation4 + $0x60] sm:$0xff]
        %v211 = vld [vmem:[#allocation4 + $0x68] sm:$0xff]
        %v212 = vld [vmem:[#allocation4 + $0x70] sm:$0xff]
        %v213 = vld [vmem:[#allocation4 + $0x78] sm:$0xff]
        %v214 = vld [vmem:[#allocation4 + $0x80] sm:$0xff]
        %v215 = vld [vmem:[#allocation4 + $0x88] sm:$0xff]
        %v216 = vld [vmem:[#allocation4 + $0x90] sm:$0xff]
        %v217 = vld [vmem:[#allocation4 + $0x98] sm:$0xff]
        %v218 = vld [vmem:[#allocation4 + $0xa0] sm:$0xff]
        %v219 = vld [vmem:[#allocation4 + $0xa8] sm:$0xff]
        %v220 = vld [vmem:[#allocation4 + $0xb0] sm:$0xff]
        %v221 = vld [vmem:[#allocation4 + $0xb8] sm:$0xff]
        %v222 = vld [vmem:[#allocation4 + $0xc0] sm:$0xff]
        %v223 = vld [vmem:[#allocation4 + $0xc8] sm:$0xff]
        %v224 = vld [vmem:[#allocation4 + $0xd0] sm:$0xff]
        %v225 = vld [vmem:[#allocation4 + $0xd8] sm:$0xff]
        %v226 = vld [vmem:[#allocation4 + $0xe0] sm:$0xff]
        %v227 = vld [vmem:[#allocation4 + $0xe8] sm:$0xff]
        %v228 = vld [vmem:[#allocation4 + $0xf0] sm:$0xff]
        %v229 = vld [vmem:[#allocation4 + $0xf8] sm:$0xff]
        %v230 = vmul.f32 %v182, %v182
        %v231 = vmul.f32 %v183, %v183
        %v232 = vmul.f32 %v184, %v184
        %v233 = vmul.f32 %v185, %v185
        %v234 = vmul.f32 %v186, %v186
        %v235 = vmul.f32 %v187, %v187
        %v236 = vmul.f32 %v188, %v188
        %v237 = vmul.f32 %v189, %v189
        %v238 = vmul.f32 %v190, %v190
        %v239 = vmul.f32 %v191, %v191
        %v240 = vmul.f32 %v192, %v192
        %v241 = vmul.f32 %v193, %v193
        %v242 = vmul.f32 %v194, %v194
        %v243 = vmul.f32 %v195, %v195
        %v244 = vmul.f32 %v196, %v196
        %v245 = vmul.f32 %v197, %v197
        %246 = vadd.xlane.f32.xlu0 %v230
        %v247 = vpop.xlane.xlu0 %246
        %248 = vadd.xlane.f32.xlu0 %v231
        %v249 = vpop.xlane.xlu0 %248
        %250 = vadd.xlane.f32.xlu0 %v232
        %v251 = vpop.xlane.xlu0 %250
        %252 = vadd.xlane.f32.xlu0 %v233
        %v253 = vpop.xlane.xlu0 %252
        %254 = vadd.xlane.f32.xlu0 %v234
        %v255 = vpop.xlane.xlu0 %254
        %256 = vadd.xlane.f32.xlu0 %v235
        %v257 = vpop.xlane.xlu0 %256
        %258 = vadd.xlane.f32.xlu0 %v236
        %v259 = vpop.xlane.xlu0 %258
        %260 = vadd.xlane.f32.xlu0 %v237
        %v261 = vpop.xlane.xlu0 %260
        %262 = vadd.xlane.f32.xlu0 %v238
        %v263 = vpop.xlane.xlu0 %262
        %264 = vadd.xlane.f32.xlu0 %v239
        %v265 = vpop.xlane.xlu0 %264
        %266 = vadd.xlane.f32.xlu0 %v240
        %v267 = vpop.xlane.xlu0 %266
        %268 = vadd.xlane.f32.xlu0 %v241
        %v269 = vpop.xlane.xlu0 %268
        %270 = vadd.xlane.f32.xlu0 %v242
        %v271 = vpop.xlane.xlu0 %270
        %272 = vadd.xlane.f32.xlu0 %v243
        %v273 = vpop.xlane.xlu0 %272
        %274 = vadd.xlane.f32.xlu0 %v244
        %v275 = vpop.xlane.xlu0 %274
        %276 = vadd.xlane.f32.xlu0 %v245
        %v277 = vpop.xlane.xlu0 %276
        %v278 = vmax.f32 %v247, 1e-24
        %v279 = vmax.f32 %v249, 1e-24
        %v280 = vmax.f32 %v251, 1e-24
        %v281 = vmax.f32 %v253, 1e-24
        %v282 = vmax.f32 %v255, 1e-24
        %v283 = vmax.f32 %v257, 1e-24
        %v284 = vmax.f32 %v259, 1e-24
        %v285 = vmax.f32 %v261, 1e-24
        %v286 = vmax.f32 %v263, 1e-24
        %v287 = vmax.f32 %v265, 1e-24
        %v288 = vmax.f32 %v267, 1e-24
        %v289 = vmax.f32 %v269, 1e-24
        %v290 = vmax.f32 %v271, 1e-24
        %v291 = vmax.f32 %v273, 1e-24
        %v292 = vmax.f32 %v275, 1e-24
        %v293 = vmax.f32 %v277, 1e-24
        %v294 = vrsqrt.pop %v278
        %v295 = vrsqrt.pop %v279
        %v296 = vrsqrt.pop %v280
        %v297 = vrsqrt.pop %v281
        %v298 = vrsqrt.pop %v282
        %v299 = vrsqrt.pop %v283
        %v300 = vrsqrt.pop %v284
        %v301 = vrsqrt.pop %v285
        %v302 = vrsqrt.pop %v286
        %v303 = vrsqrt.pop %v287
        %v304 = vrsqrt.pop %v288
        %v305 = vrsqrt.pop %v289
        %v306 = vrsqrt.pop %v290
        %v307 = vrsqrt.pop %v291
        %v308 = vrsqrt.pop %v292
        %v309 = vrsqrt.pop %v293
        %v310 = vmul.f32 %v182, %v294
        %v311 = vmul.f32 %v183, %v295
        %v312 = vmul.f32 %v184, %v296
        %v313 = vmul.f32 %v185, %v297
        %v314 = vmul.f32 %v186, %v298
        %v315 = vmul.f32 %v187, %v299
        %v316 = vmul.f32 %v188, %v300
        %v317 = vmul.f32 %v189, %v301
        %v318 = vmul.f32 %v190, %v302
        %v319 = vmul.f32 %v191, %v303
        %v320 = vmul.f32 %v192, %v304
        %v321 = vmul.f32 %v193, %v305
        %v322 = vmul.f32 %v194, %v306
        %v323 = vmul.f32 %v195, %v307
        %v324 = vmul.f32 %v196, %v308
        %v325 = vmul.f32 %v197, %v309
        %v326 = vmul.f32 %v198, %v198
        %v327 = vmul.f32 %v199, %v199
        %v328 = vmul.f32 %v200, %v200
        %v329 = vmul.f32 %v201, %v201
        %v330 = vmul.f32 %v202, %v202
        %v331 = vmul.f32 %v203, %v203
        %v332 = vmul.f32 %v204, %v204
        %v333 = vmul.f32 %v205, %v205
        %v334 = vmul.f32 %v206, %v206
        %v335 = vmul.f32 %v207, %v207
        %v336 = vmul.f32 %v208, %v208
        %v337 = vmul.f32 %v209, %v209
        %v338 = vmul.f32 %v210, %v210
        %v339 = vmul.f32 %v211, %v211
        %v340 = vmul.f32 %v212, %v212
        %v341 = vmul.f32 %v213, %v213
        %v342 = vmul.f32 %v214, %v214
        %v343 = vmul.f32 %v215, %v215
        %v344 = vmul.f32 %v216, %v216
        %v345 = vmul.f32 %v217, %v217
        %v346 = vmul.f32 %v218, %v218
        %v347 = vmul.f32 %v219, %v219
        %v348 = vmul.f32 %v220, %v220
        %v349 = vmul.f32 %v221, %v221
        %v350 = vmul.f32 %v222, %v222
        %v351 = vmul.f32 %v223, %v223
        %v352 = vmul.f32 %v224, %v224
        %v353 = vmul.f32 %v225, %v225
        %v354 = vmul.f32 %v226, %v226
        %v355 = vmul.f32 %v227, %v227
        %v356 = vmul.f32 %v228, %v228
        %v357 = vmul.f32 %v229, %v229
        %358 = vadd.xlane.f32.xlu0 %v326
        %v359 = vpop.xlane.xlu0 %358
        %360 = vadd.xlane.f32.xlu0 %v327
        %v361 = vpop.xlane.xlu0 %360
        %362 = vadd.xlane.f32.xlu0 %v328
        %v363 = vpop.xlane.xlu0 %362
        %364 = vadd.xlane.f32.xlu0 %v329
        %v365 = vpop.xlane.xlu0 %364
        %366 = vadd.xlane.f32.xlu0 %v330
        %v367 = vpop.xlane.xlu0 %366
        %368 = vadd.xlane.f32.xlu0 %v331
        %v369 = vpop.xlane.xlu0 %368
        %370 = vadd.xlane.f32.xlu0 %v332
        %v371 = vpop.xlane.xlu0 %370
        %372 = vadd.xlane.f32.xlu0 %v333
        %v373 = vpop.xlane.xlu0 %372
        %374 = vadd.xlane.f32.xlu0 %v334
        %v375 = vpop.xlane.xlu0 %374
        %376 = vadd.xlane.f32.xlu0 %v335
        %v377 = vpop.xlane.xlu0 %376
        %378 = vadd.xlane.f32.xlu0 %v336
        %v379 = vpop.xlane.xlu0 %378
        %380 = vadd.xlane.f32.xlu0 %v337
        %v381 = vpop.xlane.xlu0 %380
        %382 = vadd.xlane.f32.xlu0 %v338
        %v383 = vpop.xlane.xlu0 %382
        %384 = vadd.xlane.f32.xlu0 %v339
        %v385 = vpop.xlane.xlu0 %384
        %386 = vadd.xlane.f32.xlu0 %v340
        %v387 = vpop.xlane.xlu0 %386
        %388 = vadd.xlane.f32.xlu0 %v341
        %v389 = vpop.xlane.xlu0 %388
        %390 = vadd.xlane.f32.xlu0 %v342
        %v391 = vpop.xlane.xlu0 %390
        %392 = vadd.xlane.f32.xlu0 %v343
        %v393 = vpop.xlane.xlu0 %392
        %394 = vadd.xlane.f32.xlu0 %v344
        %v395 = vpop.xlane.xlu0 %394
        %396 = vadd.xlane.f32.xlu0 %v345
        %v397 = vpop.xlane.xlu0 %396
        %398 = vadd.xlane.f32.xlu0 %v346
        %v399 = vpop.xlane.xlu0 %398
        %400 = vadd.xlane.f32.xlu0 %v347
        %v401 = vpop.xlane.xlu0 %400
        %402 = vadd.xlane.f32.xlu0 %v348
        %v403 = vpop.xlane.xlu0 %402
        %404 = vadd.xlane.f32.xlu0 %v349
        %v405 = vpop.xlane.xlu0 %404
        %406 = vadd.xlane.f32.xlu0 %v350
        %v407 = vpop.xlane.xlu0 %406
        %408 = vadd.xlane.f32.xlu0 %v351
        %v409 = vpop.xlane.xlu0 %408
        %410 = vadd.xlane.f32.xlu0 %v352
        %v411 = vpop.xlane.xlu0 %410
        %412 = vadd.xlane.f32.xlu0 %v353
        %v413 = vpop.xlane.xlu0 %412
        %414 = vadd.xlane.f32.xlu0 %v354
        %v415 = vpop.xlane.xlu0 %414
        %416 = vadd.xlane.f32.xlu0 %v355
        %v417 = vpop.xlane.xlu0 %416
        %418 = vadd.xlane.f32.xlu0 %v356
        %v419 = vpop.xlane.xlu0 %418
        %420 = vadd.xlane.f32.xlu0 %v357
        %v421 = vpop.xlane.xlu0 %420
        %v422 = vmax.f32 %v359, 1e-24
        %v423 = vmax.f32 %v361, 1e-24
        %v424 = vmax.f32 %v363, 1e-24
        %v425 = vmax.f32 %v365, 1e-24
        %v426 = vmax.f32 %v367, 1e-24
        %v427 = vmax.f32 %v369, 1e-24
        %v428 = vmax.f32 %v371, 1e-24
        %v429 = vmax.f32 %v373, 1e-24
        %v430 = vmax.f32 %v375, 1e-24
        %v431 = vmax.f32 %v377, 1e-24
        %v432 = vmax.f32 %v379, 1e-24
        %v433 = vmax.f32 %v381, 1e-24
        %v434 = vmax.f32 %v383, 1e-24
        %v435 = vmax.f32 %v385, 1e-24
        %v436 = vmax.f32 %v387, 1e-24
        %v437 = vmax.f32 %v389, 1e-24
        %v438 = vmax.f32 %v391, 1e-24
        %v439 = vmax.f32 %v393, 1e-24
        %v440 = vmax.f32 %v395, 1e-24
        %v441 = vmax.f32 %v397, 1e-24
        %v442 = vmax.f32 %v399, 1e-24
        %v443 = vmax.f32 %v401, 1e-24
        %v444 = vmax.f32 %v403, 1e-24
        %v445 = vmax.f32 %v405, 1e-24
        %v446 = vmax.f32 %v407, 1e-24
        %v447 = vmax.f32 %v409, 1e-24
        %v448 = vmax.f32 %v411, 1e-24
        %v449 = vmax.f32 %v413, 1e-24
        %v450 = vmax.f32 %v415, 1e-24
        %v451 = vmax.f32 %v417, 1e-24
        %v452 = vmax.f32 %v419, 1e-24
        %v453 = vmax.f32 %v421, 1e-24
        %v454 = vrsqrt.pop %v422
        %v455 = vrsqrt.pop %v423
        %v456 = vrsqrt.pop %v424
        %v457 = vrsqrt.pop %v425
        %v458 = vrsqrt.pop %v426
        %v459 = vrsqrt.pop %v427
        %v460 = vrsqrt.pop %v428
        %v461 = vrsqrt.pop %v429
        %v462 = vrsqrt.pop %v430
        %v463 = vrsqrt.pop %v431
        %v464 = vrsqrt.pop %v432
        %v465 = vrsqrt.pop %v433
        %v466 = vrsqrt.pop %v434
        %v467 = vrsqrt.pop %v435
        %v468 = vrsqrt.pop %v436
        %v469 = vrsqrt.pop %v437
        %v470 = vrsqrt.pop %v438
        %v471 = vrsqrt.pop %v439
        %v472 = vrsqrt.pop %v440
        %v473 = vrsqrt.pop %v441
        %v474 = vrsqrt.pop %v442
        %v475 = vrsqrt.pop %v443
        %v476 = vrsqrt.pop %v444
        %v477 = vrsqrt.pop %v445
        %v478 = vrsqrt.pop %v446
        %v479 = vrsqrt.pop %v447
        %v480 = vrsqrt.pop %v448
        %v481 = vrsqrt.pop %v449
        %v482 = vrsqrt.pop %v450
        %v483 = vrsqrt.pop %v451
        %v484 = vrsqrt.pop %v452
        %v485 = vrsqrt.pop %v453
        %v486 = vmul.f32 %v198, %v454
        %v487 = vmul.f32 %v199, %v455
        %v488 = vmul.f32 %v200, %v456
        %v489 = vmul.f32 %v201, %v457
        %v490 = vmul.f32 %v202, %v458
        %v491 = vmul.f32 %v203, %v459
        %v492 = vmul.f32 %v204, %v460
        %v493 = vmul.f32 %v205, %v461
        %v494 = vmul.f32 %v206, %v462
        %v495 = vmul.f32 %v207, %v463
        %v496 = vmul.f32 %v208, %v464
        %v497 = vmul.f32 %v209, %v465
        %v498 = vmul.f32 %v210, %v466
        %v499 = vmul.f32 %v211, %v467
        %v500 = vmul.f32 %v212, %v468
        %v501 = vmul.f32 %v213, %v469
        %v502 = vmul.f32 %v214, %v470
        %v503 = vmul.f32 %v215, %v471
        %v504 = vmul.f32 %v216, %v472
        %v505 = vmul.f32 %v217, %v473
        %v506 = vmul.f32 %v218, %v474
        %v507 = vmul.f32 %v219, %v475
        %v508 = vmul.f32 %v220, %v476
        %v509 = vmul.f32 %v221, %v477
        %v510 = vmul.f32 %v222, %v478
        %v511 = vmul.f32 %v223, %v479
        %v512 = vmul.f32 %v224, %v480
        %v513 = vmul.f32 %v225, %v481
        %v514 = vmul.f32 %v226, %v482
        %v515 = vmul.f32 %v227, %v483
        %v516 = vmul.f32 %v228, %v484
        %v517 = vmul.f32 %v229, %v485
        %518 = vmatprep.subr.mxu0 0.0
        %519 = vmatpush1.xpose.msra.mxu0 %v501
        %520 = vmatprep.subr.mxu0 0.0
        %521 = vmatpush1.xpose.msra.mxu0 %v500
        %522 = vmatprep.subr.mxu0 0.0
        %523 = vmatpush1.xpose.msra.mxu0 %v499
        %524 = vmatprep.subr.mxu0 0.0
        %525 = vmatpush1.xpose.msra.mxu0 %v498
        %526 = vmatprep.subr.mxu0 0.0
        %527 = vmatpush1.xpose.msra.mxu0 %v497
        %528 = vmatprep.subr.mxu0 0.0
        %529 = vmatpush1.xpose.msra.mxu0 %v496
        %530 = vmatprep.subr.mxu0 0.0
        %531 = vmatpush1.xpose.msra.mxu0 %v495
        %532 = vmatprep.subr.mxu0 0.0
        %533 = vmatpush1.xpose.msra.mxu0 %v494
        %534 = vmatprep.subr.mxu0 0.0
        %535 = vmatpush1.xpose.msra.mxu0 %v493
        %536 = vmatprep.subr.mxu0 0.0
        %537 = vmatpush1.xpose.msra.mxu0 %v492
        %538 = vmatprep.subr.mxu0 0.0
        %539 = vmatpush1.xpose.msra.mxu0 %v491
        %540 = vmatprep.subr.mxu0 0.0
        %541 = vmatpush1.xpose.msra.mxu0 %v490
        %542 = vmatprep.subr.mxu0 0.0
        %543 = vmatpush1.xpose.msra.mxu0 %v489
        %544 = vmatprep.subr.mxu0 0.0
        %545 = vmatpush1.xpose.msra.mxu0 %v488
        %546 = vmatprep.subr.mxu0 0.0
        %547 = vmatpush1.xpose.msra.mxu0 %v487
        %548 = vmatprep.subr.mxu0 0.0
        %549 = vmatpush1.xpose.msra.mxu0 %v486
        %550 = vmatprep.subr.mxu0 0.0
        %551 = vmatpush2.xpose.msra.mxu0 %v517
        %552 = vmatprep.subr.mxu0 0.0
        %553 = vmatpush2.xpose.msra.mxu0 %v516
        %554 = vmatprep.subr.mxu0 0.0
        %555 = vmatpush2.xpose.msra.mxu0 %v515
        %556 = vmatprep.subr.mxu0 0.0
        %557 = vmatpush2.xpose.msra.mxu0 %v514
        %558 = vmatprep.subr.mxu0 0.0
        %559 = vmatpush2.xpose.msra.mxu0 %v513
        %560 = vmatprep.subr.mxu0 0.0
        %561 = vmatpush2.xpose.msra.mxu0 %v512
        %562 = vmatprep.subr.mxu0 0.0
        %563 = vmatpush2.xpose.msra.mxu0 %v511
        %564 = vmatprep.subr.mxu0 0.0
        %565 = vmatpush2.xpose.msra.mxu0 %v510
        %566 = vmatprep.subr.mxu0 0.0
        %567 = vmatpush2.xpose.msra.mxu0 %v509
        %568 = vmatprep.subr.mxu0 0.0
        %569 = vmatpush2.xpose.msra.mxu0 %v508
        %570 = vmatprep.subr.mxu0 0.0
        %571 = vmatpush2.xpose.msra.mxu0 %v507
        %572 = vmatprep.subr.mxu0 0.0
        %573 = vmatpush2.xpose.msra.mxu0 %v506
        %574 = vmatprep.subr.mxu0 0.0
        %575 = vmatpush2.xpose.msra.mxu0 %v505
        %576 = vmatprep.subr.mxu0 0.0
        %577 = vmatpush2.xpose.msra.mxu0 %v504
        %578 = vmatprep.subr.mxu0 0.0
        %579 = vmatpush2.xpose.msra.mxu0 %v503
        %580 = vmatprep.subr.mxu0 0.0
        %581 = vmatpush2.xpose.msra.mxu0 %v502
        %582 = vmatprep.mubr.f32.mxu0 0.0
        %583 = vmatmul.mubr.f32.gmra.mxu0 %v310
        %v584 = vpop.f32.mrf.mxu0
        %v585 = vadd.f32 0.0, %v584
        %v586 = vpop.f32.mrf.mxu0
        %v587 = vadd.f32 0.0, %v586
        %588 = vmatprep.mubr.f32.mxu0 0.0
        %589 = vmatmul.mubr.f32.gmra.mxu0 %v311
        %v590 = vpop.f32.mrf.mxu0
        %v591 = vadd.f32 0.0, %v590
        %v592 = vpop.f32.mrf.mxu0
        %v593 = vadd.f32 0.0, %v592
        %594 = vmatprep.mubr.f32.mxu0 0.0
        %595 = vmatmul.mubr.f32.gmra.mxu0 %v312
        %v596 = vpop.f32.mrf.mxu0
        %v597 = vadd.f32 0.0, %v596
        %v598 = vpop.f32.mrf.mxu0
        %v599 = vadd.f32 0.0, %v598
        %600 = vmatprep.mubr.f32.mxu0 0.0
        %601 = vmatmul.mubr.f32.gmra.mxu0 %v313
        %v602 = vpop.f32.mrf.mxu0
        %v603 = vadd.f32 0.0, %v602
        %v604 = vpop.f32.mrf.mxu0
        %v605 = vadd.f32 0.0, %v604
        %606 = vmatprep.mubr.f32.mxu0 0.0
        %607 = vmatmul.mubr.f32.gmra.mxu0 %v314
        %v608 = vpop.f32.mrf.mxu0
        %v609 = vadd.f32 0.0, %v608
        %v610 = vpop.f32.mrf.mxu0
        %v611 = vadd.f32 0.0, %v610
        %612 = vmatprep.mubr.f32.mxu0 0.0
        %613 = vmatmul.mubr.f32.gmra.mxu0 %v315
        %v614 = vpop.f32.mrf.mxu0
        %v615 = vadd.f32 0.0, %v614
        %v616 = vpop.f32.mrf.mxu0
        %v617 = vadd.f32 0.0, %v616
        %618 = vmatprep.mubr.f32.mxu0 0.0
        %619 = vmatmul.mubr.f32.gmra.mxu0 %v316
        %v620 = vpop.f32.mrf.mxu0
        %v621 = vadd.f32 0.0, %v620
        %v622 = vpop.f32.mrf.mxu0
        %v623 = vadd.f32 0.0, %v622
        %624 = vmatprep.mubr.f32.mxu0 0.0
        %625 = vmatmul.mubr.f32.gmra.mxu0 %v317
        %v626 = vpop.f32.mrf.mxu0
        %v627 = vadd.f32 0.0, %v626
        %v628 = vpop.f32.mrf.mxu0
        %v629 = vadd.f32 0.0, %v628
        %630 = vmatprep.mubr.f32.mxu0 0.0
        %631 = vmatmul.mubr.f32.gmra.mxu0 %v318
        %v632 = vpop.f32.mrf.mxu0
        %v633 = vadd.f32 0.0, %v632
        %v634 = vpop.f32.mrf.mxu0
        %v635 = vadd.f32 0.0, %v634
        %636 = vmatprep.mubr.f32.mxu0 0.0
        %637 = vmatmul.mubr.f32.gmra.mxu0 %v319
        %v638 = vpop.f32.mrf.mxu0
        %v639 = vadd.f32 0.0, %v638
        %v640 = vpop.f32.mrf.mxu0
        %v641 = vadd.f32 0.0, %v640
        %642 = vmatprep.mubr.f32.mxu0 0.0
        %643 = vmatmul.mubr.f32.gmra.mxu0 %v320
        %v644 = vpop.f32.mrf.mxu0
        %v645 = vadd.f32 0.0, %v644
        %v646 = vpop.f32.mrf.mxu0
        %v647 = vadd.f32 0.0, %v646
        %648 = vmatprep.mubr.f32.mxu0 0.0
        %649 = vmatmul.mubr.f32.gmra.mxu0 %v321
        %v650 = vpop.f32.mrf.mxu0
        %v651 = vadd.f32 0.0, %v650
        %v652 = vpop.f32.mrf.mxu0
        %v653 = vadd.f32 0.0, %v652
        %654 = vmatprep.mubr.f32.mxu0 0.0
        %655 = vmatmul.mubr.f32.gmra.mxu0 %v322
        %v656 = vpop.f32.mrf.mxu0
        %v657 = vadd.f32 0.0, %v656
        %v658 = vpop.f32.mrf.mxu0
        %v659 = vadd.f32 0.0, %v658
        %660 = vmatprep.mubr.f32.mxu0 0.0
        %661 = vmatmul.mubr.f32.gmra.mxu0 %v323
        %v662 = vpop.f32.mrf.mxu0
        %v663 = vadd.f32 0.0, %v662
        %v664 = vpop.f32.mrf.mxu0
        %v665 = vadd.f32 0.0, %v664
        %666 = vmatprep.mubr.f32.mxu0 0.0
        %667 = vmatmul.mubr.f32.gmra.mxu0 %v324
        %v668 = vpop.f32.mrf.mxu0
        %v669 = vadd.f32 0.0, %v668
        %v670 = vpop.f32.mrf.mxu0
        %v671 = vadd.f32 0.0, %v670
        %672 = vmatprep.mubr.f32.mxu0 0.0
        %673 = vmatmul.mubr.f32.gmra.mxu0 %v325
        %v674 = vpop.f32.mrf.mxu0
        %v675 = vadd.f32 0.0, %v674
        %v676 = vpop.f32.mrf.mxu0
        %v677 = vadd.f32 0.0, %v676
        %678 = vdwg.mxu0
        %s679 = scalar_lea.vmem [#allocation4], %s181
        %v680 = vld [vmem:[%s679] sm:$0xff]
        %v681 = vld [vmem:[%s679 + $0x8] sm:$0xff]
        %v682 = vld [vmem:[%s679 + $0x10] sm:$0xff]
        %v683 = vld [vmem:[%s679 + $0x18] sm:$0xff]
        %v684 = vld [vmem:[%s679 + $0x20] sm:$0xff]
        %v685 = vld [vmem:[%s679 + $0x28] sm:$0xff]
        %v686 = vld [vmem:[%s679 + $0x30] sm:$0xff]
        %v687 = vld [vmem:[%s679 + $0x38] sm:$0xff]
        %v688 = vld [vmem:[%s679 + $0x40] sm:$0xff]
        %v689 = vld [vmem:[%s679 + $0x48] sm:$0xff]
        %v690 = vld [vmem:[%s679 + $0x50] sm:$0xff]
        %v691 = vld [vmem:[%s679 + $0x58] sm:$0xff]
        %v692 = vld [vmem:[%s679 + $0x60] sm:$0xff]
        %v693 = vld [vmem:[%s679 + $0x68] sm:$0xff]
        %v694 = vld [vmem:[%s679 + $0x70] sm:$0xff]
        %v695 = vld [vmem:[%s679 + $0x78] sm:$0xff]
        %v696 = vmul.f32 %v680, %v680
        %v697 = vmul.f32 %v681, %v681
        %v698 = vmul.f32 %v682, %v682
        %v699 = vmul.f32 %v683, %v683
        %v700 = vmul.f32 %v684, %v684
        %v701 = vmul.f32 %v685, %v685
        %v702 = vmul.f32 %v686, %v686
        %v703 = vmul.f32 %v687, %v687
        %v704 = vmul.f32 %v688, %v688
        %v705 = vmul.f32 %v689, %v689
        %v706 = vmul.f32 %v690, %v690
        %v707 = vmul.f32 %v691, %v691
        %v708 = vmul.f32 %v692, %v692
        %v709 = vmul.f32 %v693, %v693
        %v710 = vmul.f32 %v694, %v694
        %v711 = vmul.f32 %v695, %v695
        %712 = vadd.xlane.f32.xlu0 %v696
        %v713 = vpop.xlane.xlu0 %712
        %714 = vadd.xlane.f32.xlu0 %v697
        %v715 = vpop.xlane.xlu0 %714
        %716 = vadd.xlane.f32.xlu0 %v698
        %v717 = vpop.xlane.xlu0 %716
        %718 = vadd.xlane.f32.xlu0 %v699
        %v719 = vpop.xlane.xlu0 %718
        %720 = vadd.xlane.f32.xlu0 %v700
        %v721 = vpop.xlane.xlu0 %720
        %722 = vadd.xlane.f32.xlu0 %v701
        %v723 = vpop.xlane.xlu0 %722
        %724 = vadd.xlane.f32.xlu0 %v702
        %v725 = vpop.xlane.xlu0 %724
        %726 = vadd.xlane.f32.xlu0 %v703
        %v727 = vpop.xlane.xlu0 %726
        %728 = vadd.xlane.f32.xlu0 %v704
        %v729 = vpop.xlane.xlu0 %728
        %730 = vadd.xlane.f32.xlu0 %v705
        %v731 = vpop.xlane.xlu0 %730
        %732 = vadd.xlane.f32.xlu0 %v706
        %v733 = vpop.xlane.xlu0 %732
        %734 = vadd.xlane.f32.xlu0 %v707
        %v735 = vpop.xlane.xlu0 %734
        %736 = vadd.xlane.f32.xlu0 %v708
        %v737 = vpop.xlane.xlu0 %736
        %738 = vadd.xlane.f32.xlu0 %v709
        %v739 = vpop.xlane.xlu0 %738
        %740 = vadd.xlane.f32.xlu0 %v710
        %v741 = vpop.xlane.xlu0 %740
        %742 = vadd.xlane.f32.xlu0 %v711
        %v743 = vpop.xlane.xlu0 %742
        %v744 = vmax.f32 %v713, 1e-24
        %v745 = vmax.f32 %v715, 1e-24
        %v746 = vmax.f32 %v717, 1e-24
        %v747 = vmax.f32 %v719, 1e-24
        %v748 = vmax.f32 %v721, 1e-24
        %v749 = vmax.f32 %v723, 1e-24
        %v750 = vmax.f32 %v725, 1e-24
        %v751 = vmax.f32 %v727, 1e-24
        %v752 = vmax.f32 %v729, 1e-24
        %v753 = vmax.f32 %v731, 1e-24
        %v754 = vmax.f32 %v733, 1e-24
        %v755 = vmax.f32 %v735, 1e-24
        %v756 = vmax.f32 %v737, 1e-24
        %v757 = vmax.f32 %v739, 1e-24
        %v758 = vmax.f32 %v741, 1e-24
        %v759 = vmax.f32 %v743, 1e-24
        %v760 = vrsqrt.pop %v744
        %v761 = vrsqrt.pop %v745
        %v762 = vrsqrt.pop %v746
        %v763 = vrsqrt.pop %v747
        %v764 = vrsqrt.pop %v748
        %v765 = vrsqrt.pop %v749
        %v766 = vrsqrt.pop %v750
        %v767 = vrsqrt.pop %v751
        %v768 = vrsqrt.pop %v752
        %v769 = vrsqrt.pop %v753
        %v770 = vrsqrt.pop %v754
        %v771 = vrsqrt.pop %v755
        %v772 = vrsqrt.pop %v756
        %v773 = vrsqrt.pop %v757
        %v774 = vrsqrt.pop %v758
        %v775 = vrsqrt.pop %v759
        %v776 = vmul.f32 %v680, %v760
        %v777 = vmul.f32 %v681, %v761
        %v778 = vmul.f32 %v682, %v762
        %v779 = vmul.f32 %v683, %v763
        %v780 = vmul.f32 %v684, %v764
        %v781 = vmul.f32 %v685, %v765
        %v782 = vmul.f32 %v686, %v766
        %v783 = vmul.f32 %v687, %v767
        %v784 = vmul.f32 %v688, %v768
        %v785 = vmul.f32 %v689, %v769
        %v786 = vmul.f32 %v690, %v770
        %v787 = vmul.f32 %v691, %v771
        %v788 = vmul.f32 %v692, %v772
        %v789 = vmul.f32 %v693, %v773
        %v790 = vmul.f32 %v694, %v774
        %v791 = vmul.f32 %v695, %v775
        %v792 = vmul.f32 %v310, %v776
        %v793 = vmul.f32 %v311, %v777
        %v794 = vmul.f32 %v312, %v778
        %v795 = vmul.f32 %v313, %v779
        %v796 = vmul.f32 %v314, %v780
        %v797 = vmul.f32 %v315, %v781
        %v798 = vmul.f32 %v316, %v782
        %v799 = vmul.f32 %v317, %v783
        %v800 = vmul.f32 %v318, %v784
        %v801 = vmul.f32 %v319, %v785
        %v802 = vmul.f32 %v320, %v786
        %v803 = vmul.f32 %v321, %v787
        %v804 = vmul.f32 %v322, %v788
        %v805 = vmul.f32 %v323, %v789
        %v806 = vmul.f32 %v324, %v790
        %v807 = vmul.f32 %v325, %v791
        %808 = vadd.xlane.f32.xlu0 %v792
        %v809 = vpop.xlane.xlu0 %808
        %810 = vadd.xlane.f32.xlu0 %v793
        %v811 = vpop.xlane.xlu0 %810
        %812 = vadd.xlane.f32.xlu0 %v794
        %v813 = vpop.xlane.xlu0 %812
        %814 = vadd.xlane.f32.xlu0 %v795
        %v815 = vpop.xlane.xlu0 %814
        %816 = vadd.xlane.f32.xlu0 %v796
        %v817 = vpop.xlane.xlu0 %816
        %818 = vadd.xlane.f32.xlu0 %v797
        %v819 = vpop.xlane.xlu0 %818
        %820 = vadd.xlane.f32.xlu0 %v798
        %v821 = vpop.xlane.xlu0 %820
        %822 = vadd.xlane.f32.xlu0 %v799
        %v823 = vpop.xlane.xlu0 %822
        %824 = vadd.xlane.f32.xlu0 %v800
        %v825 = vpop.xlane.xlu0 %824
        %826 = vadd.xlane.f32.xlu0 %v801
        %v827 = vpop.xlane.xlu0 %826
        %828 = vadd.xlane.f32.xlu0 %v802
        %v829 = vpop.xlane.xlu0 %828
        %830 = vadd.xlane.f32.xlu0 %v803
        %v831 = vpop.xlane.xlu0 %830
        %832 = vadd.xlane.f32.xlu0 %v804
        %v833 = vpop.xlane.xlu0 %832
        %834 = vadd.xlane.f32.xlu0 %v805
        %v835 = vpop.xlane.xlu0 %834
        %836 = vadd.xlane.f32.xlu0 %v806
        %v837 = vpop.xlane.xlu0 %836
        %838 = vadd.xlane.f32.xlu0 %v807
        %v839 = vpop.xlane.xlu0 %838
        %v840 = vsub.f32 %v585, 0.2
        %v841 = vsub.f32 %v587, 0.2
        %v842 = vsub.f32 %v591, 0.2
        %v843 = vsub.f32 %v593, 0.2
        %v844 = vsub.f32 %v597, 0.2
        %v845 = vsub.f32 %v599, 0.2
        %v846 = vsub.f32 %v603, 0.2
        %v847 = vsub.f32 %v605, 0.2
        %v848 = vsub.f32 %v609, 0.2
        %v849 = vsub.f32 %v611, 0.2
        %v850 = vsub.f32 %v615, 0.2
        %v851 = vsub.f32 %v617, 0.2
        %v852 = vsub.f32 %v621, 0.2
        %v853 = vsub.f32 %v623, 0.2
        %v854 = vsub.f32 %v627, 0.2
        %v855 = vsub.f32 %v629, 0.2
        %v856 = vsub.f32 %v633, 0.2
        %v857 = vsub.f32 %v635, 0.2
        %v858 = vsub.f32 %v639, 0.2
        %v859 = vsub.f32 %v641, 0.2
        %v860 = vsub.f32 %v645, 0.2
        %v861 = vsub.f32 %v647, 0.2
        %v862 = vsub.f32 %v651, 0.2
        %v863 = vsub.f32 %v653, 0.2
        %v864 = vsub.f32 %v657, 0.2
        %v865 = vsub.f32 %v659, 0.2
        %v866 = vsub.f32 %v663, 0.2
        %v867 = vsub.f32 %v665, 0.2
        %v868 = vsub.f32 %v669, 0.2
        %v869 = vsub.f32 %v671, 0.2
        %v870 = vsub.f32 %v675, 0.2
        %v871 = vsub.f32 %v677, 0.2
        %v872 = vmul.f32 %v840, %v840
        %v873 = vmul.f32 %v841, %v841
        %v874 = vmul.f32 %v842, %v842
        %v875 = vmul.f32 %v843, %v843
        %v876 = vmul.f32 %v844, %v844
        %v877 = vmul.f32 %v845, %v845
        %v878 = vmul.f32 %v846, %v846
        %v879 = vmul.f32 %v847, %v847
        %v880 = vmul.f32 %v848, %v848
        %v881 = vmul.f32 %v849, %v849
        %v882 = vmul.f32 %v850, %v850
        %v883 = vmul.f32 %v851, %v851
        %v884 = vmul.f32 %v852, %v852
        %v885 = vmul.f32 %v853, %v853
        %v886 = vmul.f32 %v854, %v854
        %v887 = vmul.f32 %v855, %v855
        %v888 = vmul.f32 %v856, %v856
        %v889 = vmul.f32 %v857, %v857
        %v890 = vmul.f32 %v858, %v858
        %v891 = vmul.f32 %v859, %v859
        %v892 = vmul.f32 %v860, %v860
        %v893 = vmul.f32 %v861, %v861
        %v894 = vmul.f32 %v862, %v862
        %v895 = vmul.f32 %v863, %v863
        %v896 = vmul.f32 %v864, %v864
        %v897 = vmul.f32 %v865, %v865
        %v898 = vmul.f32 %v866, %v866
        %v899 = vmul.f32 %v867, %v867
        %v900 = vmul.f32 %v868, %v868
        %v901 = vmul.f32 %v869, %v869
        %v902 = vmul.f32 %v870, %v870
        %v903 = vmul.f32 %v871, %v871
        %v904 = vmul.f32 %v872, -0.5
        %v905 = vmul.f32 %v873, -0.5
        %v906 = vmul.f32 %v874, -0.5
        %v907 = vmul.f32 %v875, -0.5
        %v908 = vmul.f32 %v876, -0.5
        %v909 = vmul.f32 %v877, -0.5
        %v910 = vmul.f32 %v878, -0.5
        %v911 = vmul.f32 %v879, -0.5
        %v912 = vmul.f32 %v880, -0.5
        %v913 = vmul.f32 %v881, -0.5
        %v914 = vmul.f32 %v882, -0.5
        %v915 = vmul.f32 %v883, -0.5
        %v916 = vmul.f32 %v884, -0.5
        %v917 = vmul.f32 %v885, -0.5
        %v918 = vmul.f32 %v886, -0.5
        %v919 = vmul.f32 %v887, -0.5
        %v920 = vmul.f32 %v888, -0.5
        %v921 = vmul.f32 %v889, -0.5
        %v922 = vmul.f32 %v890, -0.5
        %v923 = vmul.f32 %v891, -0.5
        %v924 = vmul.f32 %v892, -0.5
        %v925 = vmul.f32 %v893, -0.5
        %v926 = vmul.f32 %v894, -0.5
        %v927 = vmul.f32 %v895, -0.5
        %v928 = vmul.f32 %v896, -0.5
        %v929 = vmul.f32 %v897, -0.5
        %v930 = vmul.f32 %v898, -0.5
        %v931 = vmul.f32 %v899, -0.5
        %v932 = vmul.f32 %v900, -0.5
        %v933 = vmul.f32 %v901, -0.5
        %v934 = vmul.f32 %v902, -0.5
        %v935 = vmul.f32 %v903, -0.5
        %v936 = vmul.f32 %v904, 1.442695
        %v937 = vpow.pop %v936
        %v938 = vmul.f32 %v905, 1.442695
        %v939 = vpow.pop %v938
        %v940 = vmul.f32 %v906, 1.442695
        %v941 = vpow.pop %v940
        %v942 = vmul.f32 %v907, 1.442695
        %v943 = vpow.pop %v942
        %v944 = vmul.f32 %v908, 1.442695
        %v945 = vpow.pop %v944
        %v946 = vmul.f32 %v909, 1.442695
        %v947 = vpow.pop %v946
        %v948 = vmul.f32 %v910, 1.442695
        %v949 = vpow.pop %v948
        %v950 = vmul.f32 %v911, 1.442695
        %v951 = vpow.pop %v950
        %v952 = vmul.f32 %v912, 1.442695
        %v953 = vpow.pop %v952
        %v954 = vmul.f32 %v913, 1.442695
        %v955 = vpow.pop %v954
        %v956 = vmul.f32 %v914, 1.442695
        %v957 = vpow.pop %v956
        %v958 = vmul.f32 %v915, 1.442695
        %v959 = vpow.pop %v958
        %v960 = vmul.f32 %v916, 1.442695
        %v961 = vpow.pop %v960
        %v962 = vmul.f32 %v917, 1.442695
        %v963 = vpow.pop %v962
        %v964 = vmul.f32 %v918, 1.442695
        %v965 = vpow.pop %v964
        %v966 = vmul.f32 %v919, 1.442695
        %v967 = vpow.pop %v966
        %v968 = vmul.f32 %v920, 1.442695
        %v969 = vpow.pop %v968
        %v970 = vmul.f32 %v921, 1.442695
        %v971 = vpow.pop %v970
        %v972 = vmul.f32 %v922, 1.442695
        %v973 = vpow.pop %v972
        %v974 = vmul.f32 %v923, 1.442695
        %v975 = vpow.pop %v974
        %v976 = vmul.f32 %v924, 1.442695
        %v977 = vpow.pop %v976
        %v978 = vmul.f32 %v925, 1.442695
        %v979 = vpow.pop %v978
        %v980 = vmul.f32 %v926, 1.442695
        %v981 = vpow.pop %v980
        %v982 = vmul.f32 %v927, 1.442695
        %v983 = vpow.pop %v982
        %v984 = vmul.f32 %v928, 1.442695
        %v985 = vpow.pop %v984
        %v986 = vmul.f32 %v929, 1.442695
        %v987 = vpow.pop %v986
        %v988 = vmul.f32 %v930, 1.442695
        %v989 = vpow.pop %v988
        %v990 = vmul.f32 %v931, 1.442695
        %v991 = vpow.pop %v990
        %v992 = vmul.f32 %v932, 1.442695
        %v993 = vpow.pop %v992
        %v994 = vmul.f32 %v933, 1.442695
        %v995 = vpow.pop %v994
        %v996 = vmul.f32 %v934, 1.442695
        %v997 = vpow.pop %v996
        %v998 = vmul.f32 %v935, 1.442695
        %v999 = vpow.pop %v998
        %v1000 = vsub.f32 %v809, 0.2
        %v1001 = vsub.f32 %v811, 0.2
        %v1002 = vsub.f32 %v813, 0.2
        %v1003 = vsub.f32 %v815, 0.2
        %v1004 = vsub.f32 %v817, 0.2
        %v1005 = vsub.f32 %v819, 0.2
        %v1006 = vsub.f32 %v821, 0.2
        %v1007 = vsub.f32 %v823, 0.2
        %v1008 = vsub.f32 %v825, 0.2
        %v1009 = vsub.f32 %v827, 0.2
        %v1010 = vsub.f32 %v829, 0.2
        %v1011 = vsub.f32 %v831, 0.2
        %v1012 = vsub.f32 %v833, 0.2
        %v1013 = vsub.f32 %v835, 0.2
        %v1014 = vsub.f32 %v837, 0.2
        %v1015 = vsub.f32 %v839, 0.2
        %v1016 = vmul.f32 %v1000, %v1000
        %v1017 = vmul.f32 %v1001, %v1001
        %v1018 = vmul.f32 %v1002, %v1002
        %v1019 = vmul.f32 %v1003, %v1003
        %v1020 = vmul.f32 %v1004, %v1004
        %v1021 = vmul.f32 %v1005, %v1005
        %v1022 = vmul.f32 %v1006, %v1006
        %v1023 = vmul.f32 %v1007, %v1007
        %v1024 = vmul.f32 %v1008, %v1008
        %v1025 = vmul.f32 %v1009, %v1009
        %v1026 = vmul.f32 %v1010, %v1010
        %v1027 = vmul.f32 %v1011, %v1011
        %v1028 = vmul.f32 %v1012, %v1012
        %v1029 = vmul.f32 %v1013, %v1013
        %v1030 = vmul.f32 %v1014, %v1014
        %v1031 = vmul.f32 %v1015, %v1015
        %v1032 = vmul.f32 %v1016, -0.5
        %v1033 = vmul.f32 %v1017, -0.5
        %v1034 = vmul.f32 %v1018, -0.5
        %v1035 = vmul.f32 %v1019, -0.5
        %v1036 = vmul.f32 %v1020, -0.5
        %v1037 = vmul.f32 %v1021, -0.5
        %v1038 = vmul.f32 %v1022, -0.5
        %v1039 = vmul.f32 %v1023, -0.5
        %v1040 = vmul.f32 %v1024, -0.5
        %v1041 = vmul.f32 %v1025, -0.5
        %v1042 = vmul.f32 %v1026, -0.5
        %v1043 = vmul.f32 %v1027, -0.5
        %v1044 = vmul.f32 %v1028, -0.5
        %v1045 = vmul.f32 %v1029, -0.5
        %v1046 = vmul.f32 %v1030, -0.5
        %v1047 = vmul.f32 %v1031, -0.5
        %v1048 = vmul.f32 %v1032, 1.442695
        %v1049 = vpow.pop %v1048
        %v1050 = vmul.f32 %v1033, 1.442695
        %v1051 = vpow.pop %v1050
        %v1052 = vmul.f32 %v1034, 1.442695
        %v1053 = vpow.pop %v1052
        %v1054 = vmul.f32 %v1035, 1.442695
        %v1055 = vpow.pop %v1054
        %v1056 = vmul.f32 %v1036, 1.442695
        %v1057 = vpow.pop %v1056
        %v1058 = vmul.f32 %v1037, 1.442695
        %v1059 = vpow.pop %v1058
        %v1060 = vmul.f32 %v1038, 1.442695
        %v1061 = vpow.pop %v1060
        %v1062 = vmul.f32 %v1039, 1.442695
        %v1063 = vpow.pop %v1062
        %v1064 = vmul.f32 %v1040, 1.442695
        %v1065 = vpow.pop %v1064
        %v1066 = vmul.f32 %v1041, 1.442695
        %v1067 = vpow.pop %v1066
        %v1068 = vmul.f32 %v1042, 1.442695
        %v1069 = vpow.pop %v1068
        %v1070 = vmul.f32 %v1043, 1.442695
        %v1071 = vpow.pop %v1070
        %v1072 = vmul.f32 %v1044, 1.442695
        %v1073 = vpow.pop %v1072
        %v1074 = vmul.f32 %v1045, 1.442695
        %v1075 = vpow.pop %v1074
        %v1076 = vmul.f32 %v1046, 1.442695
        %v1077 = vpow.pop %v1076
        %v1078 = vmul.f32 %v1047, 1.442695
        %v1079 = vpow.pop %v1078
        %v1080 = vadd.f32 %v937, %v939
        %1081 = vadd.xlane.f32.xlu0 %v1080
        %v1082 = vpop.xlane.xlu0 %1081
        %v1083 = vadd.f32 %v941, %v943
        %1084 = vadd.xlane.f32.xlu0 %v1083
        %v1085 = vpop.xlane.xlu0 %1084
        %v1086 = vadd.f32 %v945, %v947
        %1087 = vadd.xlane.f32.xlu0 %v1086
        %v1088 = vpop.xlane.xlu0 %1087
        %v1089 = vadd.f32 %v949, %v951
        %1090 = vadd.xlane.f32.xlu0 %v1089
        %v1091 = vpop.xlane.xlu0 %1090
        %v1092 = vadd.f32 %v953, %v955
        %1093 = vadd.xlane.f32.xlu0 %v1092
        %v1094 = vpop.xlane.xlu0 %1093
        %v1095 = vadd.f32 %v957, %v959
        %1096 = vadd.xlane.f32.xlu0 %v1095
        %v1097 = vpop.xlane.xlu0 %1096
        %v1098 = vadd.f32 %v961, %v963
        %1099 = vadd.xlane.f32.xlu0 %v1098
        %v1100 = vpop.xlane.xlu0 %1099
        %v1101 = vadd.f32 %v965, %v967
        %1102 = vadd.xlane.f32.xlu0 %v1101
        %v1103 = vpop.xlane.xlu0 %1102
        %v1104 = vadd.f32 %v969, %v971
        %1105 = vadd.xlane.f32.xlu0 %v1104
        %v1106 = vpop.xlane.xlu0 %1105
        %v1107 = vadd.f32 %v973, %v975
        %1108 = vadd.xlane.f32.xlu0 %v1107
        %v1109 = vpop.xlane.xlu0 %1108
        %v1110 = vadd.f32 %v977, %v979
        %1111 = vadd.xlane.f32.xlu0 %v1110
        %v1112 = vpop.xlane.xlu0 %1111
        %v1113 = vadd.f32 %v981, %v983
        %1114 = vadd.xlane.f32.xlu0 %v1113
        %v1115 = vpop.xlane.xlu0 %1114
        %v1116 = vadd.f32 %v985, %v987
        %1117 = vadd.xlane.f32.xlu0 %v1116
        %v1118 = vpop.xlane.xlu0 %1117
        %v1119 = vadd.f32 %v989, %v991
        %1120 = vadd.xlane.f32.xlu0 %v1119
        %v1121 = vpop.xlane.xlu0 %1120
        %v1122 = vadd.f32 %v993, %v995
        %1123 = vadd.xlane.f32.xlu0 %v1122
        %v1124 = vpop.xlane.xlu0 %1123
        %v1125 = vadd.f32 %v997, %v999
        %1126 = vadd.xlane.f32.xlu0 %v1125
        %v1127 = vpop.xlane.xlu0 %1126
        %v1128 = vsub.f32 %v1082, %v1049
        %v1129 = vsub.f32 %v1085, %v1051
        %v1130 = vsub.f32 %v1088, %v1053
        %v1131 = vsub.f32 %v1091, %v1055
        %v1132 = vsub.f32 %v1094, %v1057
        %v1133 = vsub.f32 %v1097, %v1059
        %v1134 = vsub.f32 %v1100, %v1061
        %v1135 = vsub.f32 %v1103, %v1063
        %v1136 = vsub.f32 %v1106, %v1065
        %v1137 = vsub.f32 %v1109, %v1067
        %v1138 = vsub.f32 %v1112, %v1069
        %v1139 = vsub.f32 %v1115, %v1071
        %v1140 = vsub.f32 %v1118, %v1073
        %v1141 = vsub.f32 %v1121, %v1075
        %v1142 = vsub.f32 %v1124, %v1077
        %v1143 = vsub.f32 %v1127, %v1079
        %v1144 = vadd.f32 %v1128, 0.9801987
        %v1145 = vadd.f32 %v1129, 0.9801987
        %v1146 = vadd.f32 %v1130, 0.9801987
        %v1147 = vadd.f32 %v1131, 0.9801987
        %v1148 = vadd.f32 %v1132, 0.9801987
        %v1149 = vadd.f32 %v1133, 0.9801987
        %v1150 = vadd.f32 %v1134, 0.9801987
        %v1151 = vadd.f32 %v1135, 0.9801987
        %v1152 = vadd.f32 %v1136, 0.9801987
        %v1153 = vadd.f32 %v1137, 0.9801987
        %v1154 = vadd.f32 %v1138, 0.9801987
        %v1155 = vadd.f32 %v1139, 0.9801987
        %v1156 = vadd.f32 %v1140, 0.9801987
        %v1157 = vadd.f32 %v1141, 0.9801987
        %v1158 = vadd.f32 %v1142, 0.9801987
        %v1159 = vadd.f32 %v1143, 0.9801987
        %v1160 = vsub.f32 %v1144, 54.891125
        %v1161 = vsub.f32 %v1145, 54.891125
        %v1162 = vsub.f32 %v1146, 54.891125
        %v1163 = vsub.f32 %v1147, 54.891125
        %v1164 = vsub.f32 %v1148, 54.891125
        %v1165 = vsub.f32 %v1149, 54.891125
        %v1166 = vsub.f32 %v1150, 54.891125
        %v1167 = vsub.f32 %v1151, 54.891125
        %v1168 = vsub.f32 %v1152, 54.891125
        %v1169 = vsub.f32 %v1153, 54.891125
        %v1170 = vsub.f32 %v1154, 54.891125
        %v1171 = vsub.f32 %v1155, 54.891125
        %v1172 = vsub.f32 %v1156, 54.891125
        %v1173 = vsub.f32 %v1157, 54.891125
        %v1174 = vsub.f32 %v1158, 54.891125
        %v1175 = vsub.f32 %v1159, 54.891125
        %v1176 = vrcp.pop %v1160
        %v1177 = vrcp.pop %v1161
        %v1178 = vrcp.pop %v1162
        %v1179 = vrcp.pop %v1163
        %v1180 = vrcp.pop %v1164
        %v1181 = vrcp.pop %v1165
        %v1182 = vrcp.pop %v1166
        %v1183 = vrcp.pop %v1167
        %v1184 = vrcp.pop %v1168
        %v1185 = vrcp.pop %v1169
        %v1186 = vrcp.pop %v1170
        %v1187 = vrcp.pop %v1171
        %v1188 = vrcp.pop %v1172
        %v1189 = vrcp.pop %v1173
        %v1190 = vrcp.pop %v1174
        %v1191 = vrcp.pop %v1175
        %v1192 = vmul.f32 %v1176, 200.0
        %v1193 = vmul.f32 %v1177, 200.0
        %v1194 = vmul.f32 %v1178, 200.0
        %v1195 = vmul.f32 %v1179, 200.0
        %v1196 = vmul.f32 %v1180, 200.0
        %v1197 = vmul.f32 %v1181, 200.0
        %v1198 = vmul.f32 %v1182, 200.0
        %v1199 = vmul.f32 %v1183, 200.0
        %v1200 = vmul.f32 %v1184, 200.0
        %v1201 = vmul.f32 %v1185, 200.0
        %v1202 = vmul.f32 %v1186, 200.0
        %v1203 = vmul.f32 %v1187, 200.0
        %v1204 = vmul.f32 %v1188, 200.0
        %v1205 = vmul.f32 %v1189, 200.0
        %v1206 = vmul.f32 %v1190, 200.0
        %v1207 = vmul.f32 %v1191, 200.0
        %v1208 = vlaneseq
        %v1209 = vshrl.u32 %v1208, 7
        %v1210 = vadd.s32 %v1209, 8
        %v1211 = vadd.s32 %v1209, 16
        %v1212 = vadd.s32 %v1209, 24
        %v1213 = vadd.s32 %v1209, 32
        %v1214 = vadd.s32 %v1209, 40
        %v1215 = vadd.s32 %v1209, 48
        %v1216 = vadd.s32 %v1209, 56
        %v1217 = vadd.s32 %v1209, 64
        %v1218 = vadd.s32 %v1209, 72
        %v1219 = vadd.s32 %v1209, 80
        %v1220 = vadd.s32 %v1209, 88
        %v1221 = vadd.s32 %v1209, 96
        %v1222 = vadd.s32 %v1209, 104
        %v1223 = vadd.s32 %v1209, 112
        %v1224 = vadd.s32 %v1209, 120
        %v1225 = vstv %s181
        %v1226 = vadd.s32 %v1225, %v1209
        %v1227 = vadd.s32 %v1225, %v1210
        %v1228 = vadd.s32 %v1225, %v1211
        %v1229 = vadd.s32 %v1225, %v1212
        %v1230 = vadd.s32 %v1225, %v1213
        %v1231 = vadd.s32 %v1225, %v1214
        %v1232 = vadd.s32 %v1225, %v1215
        %v1233 = vadd.s32 %v1225, %v1216
        %v1234 = vadd.s32 %v1225, %v1217
        %v1235 = vadd.s32 %v1225, %v1218
        %v1236 = vadd.s32 %v1225, %v1219
        %v1237 = vadd.s32 %v1225, %v1220
        %v1238 = vadd.s32 %v1225, %v1221
        %v1239 = vadd.s32 %v1225, %v1222
        %v1240 = vadd.s32 %v1225, %v1223
        %v1241 = vadd.s32 %v1225, %v1224
        %v1242 = vlaneseq
        %v1243 = vand.u32 %v1242, 127
        %v1244 = vadd.s32 %v1243, 128
        %vm1245 = vcmp.eq.s32.totalorder %v1243, %v1226
        %vm1246 = vcmp.eq.s32.totalorder %v1244, %v1226
        %vm1247 = vcmp.eq.s32.totalorder %v1243, %v1227
        %vm1248 = vcmp.eq.s32.totalorder %v1244, %v1227
        %vm1249 = vcmp.eq.s32.totalorder %v1243, %v1228
        %vm1250 = vcmp.eq.s32.totalorder %v1244, %v1228
        %vm1251 = vcmp.eq.s32.totalorder %v1243, %v1229
        %vm1252 = vcmp.eq.s32.totalorder %v1244, %v1229
        %vm1253 = vcmp.eq.s32.totalorder %v1243, %v1230
        %vm1254 = vcmp.eq.s32.totalorder %v1244, %v1230
        %vm1255 = vcmp.eq.s32.totalorder %v1243, %v1231
        %vm1256 = vcmp.eq.s32.totalorder %v1244, %v1231
        %vm1257 = vcmp.eq.s32.totalorder %v1243, %v1232
        %vm1258 = vcmp.eq.s32.totalorder %v1244, %v1232
        %vm1259 = vcmp.eq.s32.totalorder %v1243, %v1233
        %vm1260 = vcmp.eq.s32.totalorder %v1244, %v1233
        %vm1261 = vcmp.eq.s32.totalorder %v1243, %v1234
        %vm1262 = vcmp.eq.s32.totalorder %v1244, %v1234
        %vm1263 = vcmp.eq.s32.totalorder %v1243, %v1235
        %vm1264 = vcmp.eq.s32.totalorder %v1244, %v1235
        %vm1265 = vcmp.eq.s32.totalorder %v1243, %v1236
        %vm1266 = vcmp.eq.s32.totalorder %v1244, %v1236
        %vm1267 = vcmp.eq.s32.totalorder %v1243, %v1237
        %vm1268 = vcmp.eq.s32.totalorder %v1244, %v1237
        %vm1269 = vcmp.eq.s32.totalorder %v1243, %v1238
        %vm1270 = vcmp.eq.s32.totalorder %v1244, %v1238
        %vm1271 = vcmp.eq.s32.totalorder %v1243, %v1239
        %vm1272 = vcmp.eq.s32.totalorder %v1244, %v1239
        %vm1273 = vcmp.eq.s32.totalorder %v1243, %v1240
        %vm1274 = vcmp.eq.s32.totalorder %v1244, %v1240
        %vm1275 = vcmp.eq.s32.totalorder %v1243, %v1241
        %vm1276 = vcmp.eq.s32.totalorder %v1244, %v1241
        %v1277 = vmul.f32 %v937, %v1192
        %v1278 = vmul.f32 %v939, %v1192
        %v1279 = vmul.f32 %v941, %v1193
        %v1280 = vmul.f32 %v943, %v1193
        %v1281 = vmul.f32 %v945, %v1194
        %v1282 = vmul.f32 %v947, %v1194
        %v1283 = vmul.f32 %v949, %v1195
        %v1284 = vmul.f32 %v951, %v1195
        %v1285 = vmul.f32 %v953, %v1196
        %v1286 = vmul.f32 %v955, %v1196
        %v1287 = vmul.f32 %v957, %v1197
        %v1288 = vmul.f32 %v959, %v1197
        %v1289 = vmul.f32 %v961, %v1198
        %v1290 = vmul.f32 %v963, %v1198
        %v1291 = vmul.f32 %v965, %v1199
        %v1292 = vmul.f32 %v967, %v1199
        %v1293 = vmul.f32 %v969, %v1200
        %v1294 = vmul.f32 %v971, %v1200
        %v1295 = vmul.f32 %v973, %v1201
        %v1296 = vmul.f32 %v975, %v1201
        %v1297 = vmul.f32 %v977, %v1202
        %v1298 = vmul.f32 %v979, %v1202
        %v1299 = vmul.f32 %v981, %v1203
        %v1300 = vmul.f32 %v983, %v1203
        %v1301 = vmul.f32 %v985, %v1204
        %v1302 = vmul.f32 %v987, %v1204
        %v1303 = vmul.f32 %v989, %v1205
        %v1304 = vmul.f32 %v991, %v1205
        %v1305 = vmul.f32 %v993, %v1206
        %v1306 = vmul.f32 %v995, %v1206
        %v1307 = vmul.f32 %v997, %v1207
        %v1308 = vmul.f32 %v999, %v1207
        %v1309 = vmul.f32 %v585, %v1277
        %v1310 = vmul.f32 %v587, %v1278
        %v1311 = vmul.f32 %v591, %v1279
        %v1312 = vmul.f32 %v593, %v1280
        %v1313 = vmul.f32 %v597, %v1281
        %v1314 = vmul.f32 %v599, %v1282
        %v1315 = vmul.f32 %v603, %v1283
        %v1316 = vmul.f32 %v605, %v1284
        %v1317 = vmul.f32 %v609, %v1285
        %v1318 = vmul.f32 %v611, %v1286
        %v1319 = vmul.f32 %v615, %v1287
        %v1320 = vmul.f32 %v617, %v1288
        %v1321 = vmul.f32 %v621, %v1289
        %v1322 = vmul.f32 %v623, %v1290
        %v1323 = vmul.f32 %v627, %v1291
        %v1324 = vmul.f32 %v629, %v1292
        %v1325 = vmul.f32 %v633, %v1293
        %v1326 = vmul.f32 %v635, %v1294
        %v1327 = vmul.f32 %v639, %v1295
        %v1328 = vmul.f32 %v641, %v1296
        %v1329 = vmul.f32 %v645, %v1297
        %v1330 = vmul.f32 %v647, %v1298
        %v1331 = vmul.f32 %v651, %v1299
        %v1332 = vmul.f32 %v653, %v1300
        %v1333 = vmul.f32 %v657, %v1301
        %v1334 = vmul.f32 %v659, %v1302
        %v1335 = vmul.f32 %v663, %v1303
        %v1336 = vmul.f32 %v665, %v1304
        %v1337 = vmul.f32 %v669, %v1305
        %v1338 = vmul.f32 %v671, %v1306
        %v1339 = vmul.f32 %v675, %v1307
        %v1340 = vmul.f32 %v677, %v1308
        %v1341 = vsel %vm1245, %v585, %v1309
        %v1342 = vsel %vm1246, %v587, %v1310
        %v1343 = vsel %vm1247, %v591, %v1311
        %v1344 = vsel %vm1248, %v593, %v1312
        %v1345 = vsel %vm1249, %v597, %v1313
        %v1346 = vsel %vm1250, %v599, %v1314
        %v1347 = vsel %vm1251, %v603, %v1315
        %v1348 = vsel %vm1252, %v605, %v1316
        %v1349 = vsel %vm1253, %v609, %v1317
        %v1350 = vsel %vm1254, %v611, %v1318
        %v1351 = vsel %vm1255, %v615, %v1319
        %v1352 = vsel %vm1256, %v617, %v1320
        %v1353 = vsel %vm1257, %v621, %v1321
        %v1354 = vsel %vm1258, %v623, %v1322
        %v1355 = vsel %vm1259, %v627, %v1323
        %v1356 = vsel %vm1260, %v629, %v1324
        %v1357 = vsel %vm1261, %v633, %v1325
        %v1358 = vsel %vm1262, %v635, %v1326
        %v1359 = vsel %vm1263, %v639, %v1327
        %v1360 = vsel %vm1264, %v641, %v1328
        %v1361 = vsel %vm1265, %v645, %v1329
        %v1362 = vsel %vm1266, %v647, %v1330
        %v1363 = vsel %vm1267, %v651, %v1331
        %v1364 = vsel %vm1268, %v653, %v1332
        %v1365 = vsel %vm1269, %v657, %v1333
        %v1366 = vsel %vm1270, %v659, %v1334
        %v1367 = vsel %vm1271, %v663, %v1335
        %v1368 = vsel %vm1272, %v665, %v1336
        %v1369 = vsel %vm1273, %v669, %v1337
        %v1370 = vsel %vm1274, %v671, %v1338
        %v1371 = vsel %vm1275, %v675, %v1339
        %v1372 = vsel %vm1276, %v677, %v1340
        %v1373 = vmul.f32 %v1341, 10.0
        %v1374 = vmul.f32 %v1342, 10.0
        %v1375 = vmul.f32 %v1343, 10.0
        %v1376 = vmul.f32 %v1344, 10.0
        %v1377 = vmul.f32 %v1345, 10.0
        %v1378 = vmul.f32 %v1346, 10.0
        %v1379 = vmul.f32 %v1347, 10.0
        %v1380 = vmul.f32 %v1348, 10.0
        %v1381 = vmul.f32 %v1349, 10.0
        %v1382 = vmul.f32 %v1350, 10.0
        %v1383 = vmul.f32 %v1351, 10.0
        %v1384 = vmul.f32 %v1352, 10.0
        %v1385 = vmul.f32 %v1353, 10.0
        %v1386 = vmul.f32 %v1354, 10.0
        %v1387 = vmul.f32 %v1355, 10.0
        %v1388 = vmul.f32 %v1356, 10.0
        %v1389 = vmul.f32 %v1357, 10.0
        %v1390 = vmul.f32 %v1358, 10.0
        %v1391 = vmul.f32 %v1359, 10.0
        %v1392 = vmul.f32 %v1360, 10.0
        %v1393 = vmul.f32 %v1361, 10.0
        %v1394 = vmul.f32 %v1362, 10.0
        %v1395 = vmul.f32 %v1363, 10.0
        %v1396 = vmul.f32 %v1364, 10.0
        %v1397 = vmul.f32 %v1365, 10.0
        %v1398 = vmul.f32 %v1366, 10.0
        %v1399 = vmul.f32 %v1367, 10.0
        %v1400 = vmul.f32 %v1368, 10.0
        %v1401 = vmul.f32 %v1369, 10.0
        %v1402 = vmul.f32 %v1370, 10.0
        %v1403 = vmul.f32 %v1371, 10.0
        %v1404 = vmul.f32 %v1372, 10.0
        %vm1405 = vcmp.lt.s32.totalorder %v1243, 200
        %vm1406 = vcmp.lt.s32.totalorder %v1244, 200
        %v1407 = vsel %vm1405, %v1373, -1e+30
        %v1408 = vsel %vm1406, %v1374, -1e+30
        %v1409 = vsel %vm1405, %v1375, -1e+30
        %v1410 = vsel %vm1406, %v1376, -1e+30
        %v1411 = vsel %vm1405, %v1377, -1e+30
        %v1412 = vsel %vm1406, %v1378, -1e+30
        %v1413 = vsel %vm1405, %v1379, -1e+30
        %v1414 = vsel %vm1406, %v1380, -1e+30
        %v1415 = vsel %vm1405, %v1381, -1e+30
        %v1416 = vsel %vm1406, %v1382, -1e+30
        %v1417 = vsel %vm1405, %v1383, -1e+30
        %v1418 = vsel %vm1406, %v1384, -1e+30
        %v1419 = vsel %vm1405, %v1385, -1e+30
        %v1420 = vsel %vm1406, %v1386, -1e+30
        %v1421 = vsel %vm1405, %v1387, -1e+30
        %v1422 = vsel %vm1406, %v1388, -1e+30
        %v1423 = vsel %vm1405, %v1389, -1e+30
        %v1424 = vsel %vm1406, %v1390, -1e+30
        %v1425 = vsel %vm1405, %v1391, -1e+30
        %v1426 = vsel %vm1406, %v1392, -1e+30
        %v1427 = vsel %vm1405, %v1393, -1e+30
        %v1428 = vsel %vm1406, %v1394, -1e+30
        %v1429 = vsel %vm1405, %v1395, -1e+30
        %v1430 = vsel %vm1406, %v1396, -1e+30
        %v1431 = vsel %vm1405, %v1397, -1e+30
        %v1432 = vsel %vm1406, %v1398, -1e+30
        %v1433 = vsel %vm1405, %v1399, -1e+30
        %v1434 = vsel %vm1406, %v1400, -1e+30
        %v1435 = vsel %vm1405, %v1401, -1e+30
        %v1436 = vsel %vm1406, %v1402, -1e+30
        %v1437 = vsel %vm1405, %v1403, -1e+30
        %v1438 = vsel %vm1406, %v1404, -1e+30
        %v1439 = vmax.f32 %v1407, %v1408
        %1440 = vmax.xlane.f32.xlu0 %v1439
        %v1441 = vpop.xlane.xlu0 %1440
        %v1442 = vmax.f32 %v1409, %v1410
        %1443 = vmax.xlane.f32.xlu0 %v1442
        %v1444 = vpop.xlane.xlu0 %1443
        %v1445 = vmax.f32 %v1411, %v1412
        %1446 = vmax.xlane.f32.xlu0 %v1445
        %v1447 = vpop.xlane.xlu0 %1446
        %v1448 = vmax.f32 %v1413, %v1414
        %1449 = vmax.xlane.f32.xlu0 %v1448
        %v1450 = vpop.xlane.xlu0 %1449
        %v1451 = vmax.f32 %v1415, %v1416
        %1452 = vmax.xlane.f32.xlu0 %v1451
        %v1453 = vpop.xlane.xlu0 %1452
        %v1454 = vmax.f32 %v1417, %v1418
        %1455 = vmax.xlane.f32.xlu0 %v1454
        %v1456 = vpop.xlane.xlu0 %1455
        %v1457 = vmax.f32 %v1419, %v1420
        %1458 = vmax.xlane.f32.xlu0 %v1457
        %v1459 = vpop.xlane.xlu0 %1458
        %v1460 = vmax.f32 %v1421, %v1422
        %1461 = vmax.xlane.f32.xlu0 %v1460
        %v1462 = vpop.xlane.xlu0 %1461
        %v1463 = vmax.f32 %v1423, %v1424
        %1464 = vmax.xlane.f32.xlu0 %v1463
        %v1465 = vpop.xlane.xlu0 %1464
        %v1466 = vmax.f32 %v1425, %v1426
        %1467 = vmax.xlane.f32.xlu0 %v1466
        %v1468 = vpop.xlane.xlu0 %1467
        %v1469 = vmax.f32 %v1427, %v1428
        %1470 = vmax.xlane.f32.xlu0 %v1469
        %v1471 = vpop.xlane.xlu0 %1470
        %v1472 = vmax.f32 %v1429, %v1430
        %1473 = vmax.xlane.f32.xlu0 %v1472
        %v1474 = vpop.xlane.xlu0 %1473
        %v1475 = vmax.f32 %v1431, %v1432
        %1476 = vmax.xlane.f32.xlu0 %v1475
        %v1477 = vpop.xlane.xlu0 %1476
        %v1478 = vmax.f32 %v1433, %v1434
        %1479 = vmax.xlane.f32.xlu0 %v1478
        %v1480 = vpop.xlane.xlu0 %1479
        %v1481 = vmax.f32 %v1435, %v1436
        %1482 = vmax.xlane.f32.xlu0 %v1481
        %v1483 = vpop.xlane.xlu0 %1482
        %v1484 = vmax.f32 %v1437, %v1438
        %1485 = vmax.xlane.f32.xlu0 %v1484
        %v1486 = vpop.xlane.xlu0 %1485
        %v1487 = vsub.f32 %v1407, %v1441
        %v1488 = vsub.f32 %v1408, %v1441
        %v1489 = vsub.f32 %v1409, %v1444
        %v1490 = vsub.f32 %v1410, %v1444
        %v1491 = vsub.f32 %v1411, %v1447
        %v1492 = vsub.f32 %v1412, %v1447
        %v1493 = vsub.f32 %v1413, %v1450
        %v1494 = vsub.f32 %v1414, %v1450
        %v1495 = vsub.f32 %v1415, %v1453
        %v1496 = vsub.f32 %v1416, %v1453
        %v1497 = vsub.f32 %v1417, %v1456
        %v1498 = vsub.f32 %v1418, %v1456
        %v1499 = vsub.f32 %v1419, %v1459
        %v1500 = vsub.f32 %v1420, %v1459
        %v1501 = vsub.f32 %v1421, %v1462
        %v1502 = vsub.f32 %v1422, %v1462
        %v1503 = vsub.f32 %v1423, %v1465
        %v1504 = vsub.f32 %v1424, %v1465
        %v1505 = vsub.f32 %v1425, %v1468
        %v1506 = vsub.f32 %v1426, %v1468
        %v1507 = vsub.f32 %v1427, %v1471
        %v1508 = vsub.f32 %v1428, %v1471
        %v1509 = vsub.f32 %v1429, %v1474
        %v1510 = vsub.f32 %v1430, %v1474
        %v1511 = vsub.f32 %v1431, %v1477
        %v1512 = vsub.f32 %v1432, %v1477
        %v1513 = vsub.f32 %v1433, %v1480
        %v1514 = vsub.f32 %v1434, %v1480
        %v1515 = vsub.f32 %v1435, %v1483
        %v1516 = vsub.f32 %v1436, %v1483
        %v1517 = vsub.f32 %v1437, %v1486
        %v1518 = vsub.f32 %v1438, %v1486
        %v1519 = vmul.f32 %v1487, 1.442695
        %v1520 = vpow.pop %v1519
        %v1521 = vmul.f32 %v1488, 1.442695
        %v1522 = vpow.pop %v1521
        %v1523 = vmul.f32 %v1489, 1.442695
        %v1524 = vpow.pop %v1523
        %v1525 = vmul.f32 %v1490, 1.442695
        %v1526 = vpow.pop %v1525
        %v1527 = vmul.f32 %v1491, 1.442695
        %v1528 = vpow.pop %v1527
        %v1529 = vmul.f32 %v1492, 1.442695
        %v1530 = vpow.pop %v1529
        %v1531 = vmul.f32 %v1493, 1.442695
        %v1532 = vpow.pop %v1531
        %v1533 = vmul.f32 %v1494, 1.442695
        %v1534 = vpow.pop %v1533
        %v1535 = vmul.f32 %v1495, 1.442695
        %v1536 = vpow.pop %v1535
        %v1537 = vmul.f32 %v1496, 1.442695
        %v1538 = vpow.pop %v1537
        %v1539 = vmul.f32 %v1497, 1.442695
        %v1540 = vpow.pop %v1539
        %v1541 = vmul.f32 %v1498, 1.442695
        %v1542 = vpow.pop %v1541
        %v1543 = vmul.f32 %v1499, 1.442695
        %v1544 = vpow.pop %v1543
        %v1545 = vmul.f32 %v1500, 1.442695
        %v1546 = vpow.pop %v1545
        %v1547 = vmul.f32 %v1501, 1.442695
        %v1548 = vpow.pop %v1547
        %v1549 = vmul.f32 %v1502, 1.442695
        %v1550 = vpow.pop %v1549
        %v1551 = vmul.f32 %v1503, 1.442695
        %v1552 = vpow.pop %v1551
        %v1553 = vmul.f32 %v1504, 1.442695
        %v1554 = vpow.pop %v1553
        %v1555 = vmul.f32 %v1505, 1.442695
        %v1556 = vpow.pop %v1555
        %v1557 = vmul.f32 %v1506, 1.442695
        %v1558 = vpow.pop %v1557
        %v1559 = vmul.f32 %v1507, 1.442695
        %v1560 = vpow.pop %v1559
        %v1561 = vmul.f32 %v1508, 1.442695
        %v1562 = vpow.pop %v1561
        %v1563 = vmul.f32 %v1509, 1.442695
        %v1564 = vpow.pop %v1563
        %v1565 = vmul.f32 %v1510, 1.442695
        %v1566 = vpow.pop %v1565
        %v1567 = vmul.f32 %v1511, 1.442695
        %v1568 = vpow.pop %v1567
        %v1569 = vmul.f32 %v1512, 1.442695
        %v1570 = vpow.pop %v1569
        %v1571 = vmul.f32 %v1513, 1.442695
        %v1572 = vpow.pop %v1571
        %v1573 = vmul.f32 %v1514, 1.442695
        %v1574 = vpow.pop %v1573
        %v1575 = vmul.f32 %v1515, 1.442695
        %v1576 = vpow.pop %v1575
        %v1577 = vmul.f32 %v1516, 1.442695
        %v1578 = vpow.pop %v1577
        %v1579 = vmul.f32 %v1517, 1.442695
        %v1580 = vpow.pop %v1579
        %v1581 = vmul.f32 %v1518, 1.442695
        %v1582 = vpow.pop %v1581
        %v1583 = vadd.f32 %v1520, %v1522
        %1584 = vadd.xlane.f32.xlu0 %v1583
        %v1585 = vpop.xlane.xlu0 %1584
        %v1586 = vadd.f32 %v1524, %v1526
        %1587 = vadd.xlane.f32.xlu0 %v1586
        %v1588 = vpop.xlane.xlu0 %1587
        %v1589 = vadd.f32 %v1528, %v1530
        %1590 = vadd.xlane.f32.xlu0 %v1589
        %v1591 = vpop.xlane.xlu0 %1590
        %v1592 = vadd.f32 %v1532, %v1534
        %1593 = vadd.xlane.f32.xlu0 %v1592
        %v1594 = vpop.xlane.xlu0 %1593
        %v1595 = vadd.f32 %v1536, %v1538
        %1596 = vadd.xlane.f32.xlu0 %v1595
        %v1597 = vpop.xlane.xlu0 %1596
        %v1598 = vadd.f32 %v1540, %v1542
        %1599 = vadd.xlane.f32.xlu0 %v1598
        %v1600 = vpop.xlane.xlu0 %1599
        %v1601 = vadd.f32 %v1544, %v1546
        %1602 = vadd.xlane.f32.xlu0 %v1601
        %v1603 = vpop.xlane.xlu0 %1602
        %v1604 = vadd.f32 %v1548, %v1550
        %1605 = vadd.xlane.f32.xlu0 %v1604
        %v1606 = vpop.xlane.xlu0 %1605
        %v1607 = vadd.f32 %v1552, %v1554
        %1608 = vadd.xlane.f32.xlu0 %v1607
        %v1609 = vpop.xlane.xlu0 %1608
        %v1610 = vadd.f32 %v1556, %v1558
        %1611 = vadd.xlane.f32.xlu0 %v1610
        %v1612 = vpop.xlane.xlu0 %1611
        %v1613 = vadd.f32 %v1560, %v1562
        %1614 = vadd.xlane.f32.xlu0 %v1613
        %v1615 = vpop.xlane.xlu0 %1614
        %v1616 = vadd.f32 %v1564, %v1566
        %1617 = vadd.xlane.f32.xlu0 %v1616
        %v1618 = vpop.xlane.xlu0 %1617
        %v1619 = vadd.f32 %v1568, %v1570
        %1620 = vadd.xlane.f32.xlu0 %v1619
        %v1621 = vpop.xlane.xlu0 %1620
        %v1622 = vadd.f32 %v1572, %v1574
        %1623 = vadd.xlane.f32.xlu0 %v1622
        %v1624 = vpop.xlane.xlu0 %1623
        %v1625 = vadd.f32 %v1576, %v1578
        %1626 = vadd.xlane.f32.xlu0 %v1625
        %v1627 = vpop.xlane.xlu0 %1626
        %v1628 = vadd.f32 %v1580, %v1582
        %1629 = vadd.xlane.f32.xlu0 %v1628
        %v1630 = vpop.xlane.xlu0 %1629
        %v1631 = vlog2.pop %v1585
        %v1632 = vmul.f32 %v1631, 0.6931472
        %v1633 = vlog2.pop %v1588
        %v1634 = vmul.f32 %v1633, 0.6931472
        %v1635 = vlog2.pop %v1591
        %v1636 = vmul.f32 %v1635, 0.6931472
        %v1637 = vlog2.pop %v1594
        %v1638 = vmul.f32 %v1637, 0.6931472
        %v1639 = vlog2.pop %v1597
        %v1640 = vmul.f32 %v1639, 0.6931472
        %v1641 = vlog2.pop %v1600
        %v1642 = vmul.f32 %v1641, 0.6931472
        %v1643 = vlog2.pop %v1603
        %v1644 = vmul.f32 %v1643, 0.6931472
        %v1645 = vlog2.pop %v1606
        %v1646 = vmul.f32 %v1645, 0.6931472
        %v1647 = vlog2.pop %v1609
        %v1648 = vmul.f32 %v1647, 0.6931472
        %v1649 = vlog2.pop %v1612
        %v1650 = vmul.f32 %v1649, 0.6931472
        %v1651 = vlog2.pop %v1615
        %v1652 = vmul.f32 %v1651, 0.6931472
        %v1653 = vlog2.pop %v1618
        %v1654 = vmul.f32 %v1653, 0.6931472
        %v1655 = vlog2.pop %v1621
        %v1656 = vmul.f32 %v1655, 0.6931472
        %v1657 = vlog2.pop %v1624
        %v1658 = vmul.f32 %v1657, 0.6931472
        %v1659 = vlog2.pop %v1627
        %v1660 = vmul.f32 %v1659, 0.6931472
        %v1661 = vlog2.pop %v1630
        %v1662 = vmul.f32 %v1661, 0.6931472
        %v1663 = vadd.f32 %v1441, %v1632
        %v1664 = vadd.f32 %v1444, %v1634
        %v1665 = vadd.f32 %v1447, %v1636
        %v1666 = vadd.f32 %v1450, %v1638
        %v1667 = vadd.f32 %v1453, %v1640
        %v1668 = vadd.f32 %v1456, %v1642
        %v1669 = vadd.f32 %v1459, %v1644
        %v1670 = vadd.f32 %v1462, %v1646
        %v1671 = vadd.f32 %v1465, %v1648
        %v1672 = vadd.f32 %v1468, %v1650
        %v1673 = vadd.f32 %v1471, %v1652
        %v1674 = vadd.f32 %v1474, %v1654
        %v1675 = vadd.f32 %v1477, %v1656
        %v1676 = vadd.f32 %v1480, %v1658
        %v1677 = vadd.f32 %v1483, %v1660
        %v1678 = vadd.f32 %v1486, %v1662
        %v1679 = vmul.f32 %v809, 10.0
        %v1680 = vmul.f32 %v811, 10.0
        %v1681 = vmul.f32 %v813, 10.0
        %v1682 = vmul.f32 %v815, 10.0
        %v1683 = vmul.f32 %v817, 10.0
        %v1684 = vmul.f32 %v819, 10.0
        %v1685 = vmul.f32 %v821, 10.0
        %v1686 = vmul.f32 %v823, 10.0
        %v1687 = vmul.f32 %v825, 10.0
        %v1688 = vmul.f32 %v827, 10.0
        %v1689 = vmul.f32 %v829, 10.0
        %v1690 = vmul.f32 %v831, 10.0
        %v1691 = vmul.f32 %v833, 10.0
        %v1692 = vmul.f32 %v835, 10.0
        %v1693 = vmul.f32 %v837, 10.0
        %v1694 = vmul.f32 %v839, 10.0
        %v1695 = vsub.f32 %v1663, %v1679
        %v1696 = vsub.f32 %v1664, %v1680
        %v1697 = vsub.f32 %v1665, %v1681
        %v1698 = vsub.f32 %v1666, %v1682
        %v1699 = vsub.f32 %v1667, %v1683
        %v1700 = vsub.f32 %v1668, %v1684
        %v1701 = vsub.f32 %v1669, %v1685
        %v1702 = vsub.f32 %v1670, %v1686
        %v1703 = vsub.f32 %v1671, %v1687
        %v1704 = vsub.f32 %v1672, %v1688
        %v1705 = vsub.f32 %v1673, %v1689
        %v1706 = vsub.f32 %v1674, %v1690
        %v1707 = vsub.f32 %v1675, %v1691
        %v1708 = vsub.f32 %v1676, %v1692
        %v1709 = vsub.f32 %v1677, %v1693
        %v1710 = vsub.f32 %v1678, %v1694
        %vm1711 = vcmask 7168
        %1712 = vst.msk [vmem:[%s179] sm:$0xff] %vm1711, %v1695
        %1713 = vst.msk [vmem:[%s179 + $0x8] sm:$0xff] %vm1711, %v1696
        %1714 = vst.msk [vmem:[%s179 + $0x10] sm:$0xff] %vm1711, %v1697
        %1715 = vst.msk [vmem:[%s179 + $0x18] sm:$0xff] %vm1711, %v1698
        %1716 = vst.msk [vmem:[%s179 + $0x20] sm:$0xff] %vm1711, %v1699
        %1717 = vst.msk [vmem:[%s179 + $0x28] sm:$0xff] %vm1711, %v1700
        %1718 = vst.msk [vmem:[%s179 + $0x30] sm:$0xff] %vm1711, %v1701
        %1719 = vst.msk [vmem:[%s179 + $0x38] sm:$0xff] %vm1711, %v1702
        %1720 = vst.msk [vmem:[%s179 + $0x40] sm:$0xff] %vm1711, %v1703
        %1721 = vst.msk [vmem:[%s179 + $0x48] sm:$0xff] %vm1711, %v1704
        %1722 = vst.msk [vmem:[%s179 + $0x50] sm:$0xff] %vm1711, %v1705
        %1723 = vst.msk [vmem:[%s179 + $0x58] sm:$0xff] %vm1711, %v1706
        %1724 = vst.msk [vmem:[%s179 + $0x60] sm:$0xff] %vm1711, %v1707
        %1725 = vst.msk [vmem:[%s179 + $0x68] sm:$0xff] %vm1711, %v1708
        %1726 = vst.msk [vmem:[%s179 + $0x70] sm:$0xff] %vm1711, %v1709
        %1727 = vst.msk [vmem:[%s179 + $0x78] sm:$0xff] %vm1711, %v1710
        %s1728 = smul.u32 16, %s17
        %p1729 = scmp.lt.s32.totalorder %s1728, 31
        %s1730 = scalar_select %p1729, %s1728, 31
        %s1731 = smul.addr %s1730, 8
        %s1732 = scalar_lea.vmem %s2, %s1731
        // Predicated region
        $region37: #{tpu_custom_call.1} parent=27 // pred_check
          %p1733 = pneg %p82
        $region38: #{tpu_custom_call.1} parent=27 // pred_check_branch
          %1735 = sbr.rel (%p1733) target = $region40
        $region39: #{tpu_custom_call.1} parent=27 // pred_region
          %s1736 = smul.u32 16, %s17
        $region40: #{tpu_custom_call.1} parent=27 // pred_fallthru
          _
      $region28: #{tpu_custom_call.1} parent=5 // pred_fallthru
        _
      %p1737 = scmp.le.s32.totalorder 2, %s12
      // Predicated region
      $region41: #{tpu_custom_call.1} parent=5 // pred_check
        %p1738 = pneg %p1737
      $region42: #{tpu_custom_call.1} parent=5 // pred_check_branch
        %1740 = sbr.rel (%p1738) target = $region44
      $region43: #{tpu_custom_call.1} parent=5 // pred_region
        %s1741 = ssub.s32 %s12, 2
        // Predicated region
        $region45: #{tpu_custom_call.1} parent=43 // pred_check
          %p1742 = pneg %p88
        $region46: #{tpu_custom_call.1} parent=43 // pred_check_branch
          %1744 = sbr.rel (%p1742) target = $region48
        $region47: #{tpu_custom_call.1} parent=43 // pred_region
          %s1745 = smul.u32 16, %s18
          %p1746 = scmp.lt.s32.totalorder %s1745, 31
          %s1747 = scalar_select %p1746, %s1745, 31
          %s1748 = smul.addr %s1747, 8
          %s1749 = scalar_lea.vmem %s2, %s1748
        $region48: #{tpu_custom_call.1} parent=43 // pred_fallthru
          _
      $region44: #{tpu_custom_call.1} parent=5 // pred_fallthru
        _
    $region6: #{tpu_custom_call.1} parent=1 // loop_footer
      %s16 = sadd.s32 1, %s12
    $region7: #{tpu_custom_call.1} parent=1 // loop_footer_branch
      %11 = sbr.rel target = $region3
    $region8: #{tpu_custom_call.1} parent=1 // loop_exit
      _
    %1750 = vsyncpa [#allocation3], 1
    %s1751 = scalar_lea.sflag [#allocation3], 1
    %1752 = vsyncpa %s1751, 1
    %1753 = vsyncpa [#allocation5], 1

</llo_original>
